<compile_context>
chip_gen: v7x
topology: tpu7x:2x2x1
jax: 0.10.0
libtpu: 0.0.40
codegen_flags: <defaults>
</compile_context>

<pallas_src>
import jax
import jax.numpy as jnp
from jax.experimental import pallas as pl
from jax.experimental.pallas import tpu as pltpu


# (n_in, n_out, relu_after) for the original (unfused) 6 Linear layers.
_LAYERS = ((4, 10, True), (10, 5, True), (5, 2, False),
           (2, 5, True), (5, 10, True), (10, 4, False))
_N_PARAMS = sum(i * o + o for i, o, _ in _LAYERS)   # 236 floats
_D_IN = _LAYERS[0][0]
_D_OUT = _LAYERS[-1][1]

_CHUNK = 256                # lanes per inner chunk; must be a multiple of 128
_MAX_CHUNKS_PER_STEP = 8    # cap: tile = 8 chunks -> 256 KiB in + 256 KiB out per step
assert _CHUNK % 128 == 0


def autoencoder_kernel(p_ref, x_ref, out_ref):
    """p_ref: flat f32 params in SMEM.
    x_ref/out_ref: (features, chunks_per_step, 8, _CHUNK) f32 in VMEM.

    Batch is folded onto (chunks, sublanes, lanes); each feature of a chunk is a
    dense (8, _CHUNK) plane, so every layer is a handful of scalar-broadcast
    FMAs on the VPU (the MXU is never touched -- K, N <= 10 per layer).
    """
    # --- Hoist ALL SMEM scalar reads out of the chunk loop (loop-invariant):
    #     one read per weight/bias per grid step instead of per chunk. ---
    off = 0
    layer_consts = []
    for n_in, n_out, _ in _LAYERS:
        w = [[p_ref[off + o * n_in + i] for i in range(n_in)] for o in range(n_out)]
        b = [p_ref[off + n_in * n_out + o] for o in range(n_out)]
        layer_consts.append((w, b))
        off += n_in * n_out + n_out

    n_chunks = x_ref.shape[1]           # chunks per grid step (static)

    def chunk_body(c, carry):
        # Live set: at most n_in + n_out = 15 planes of (8, _CHUNK) ~= 30 vregs,
        # independent of the grid-step tile size.
        h = [x_ref[f, c] for f in range(_D_IN)]
        for (w, b), (n_in, n_out, relu) in zip(layer_consts, _LAYERS):
            new_h = []
            for o in range(n_out):
                acc = h[0] * w[o][0]
                for i in range(1, n_in):
                    acc = acc + h[i] * w[o][i]
                acc = acc + b[o]
                if relu:
                    acc = jnp.maximum(acc, 0.0)
                new_h.append(acc)
            h = new_h
        for o in range(_D_OUT):
            out_ref[o, c] = h[o]        # dense, unmasked (8, _CHUNK) store
        return carry

    jax.lax.fori_loop(0, n_chunks, chunk_body, 0)


def pack_params(params):
    """params: 6 (W(out,in), b(out,)) pairs in PyTorch layout.

    No algebraic fusion (reverted): flatten all 6 layers into one f32 vector,
    per layer W row-major (out, in) then b."""
    pieces = []
    for w, b in params:
        pieces.append(w.reshape(-1))
        pieces.append(b.reshape(-1))
    flat = jnp.concatenate(pieces).astype(jnp.float32)
    assert flat.shape == (_N_PARAMS,)
    return flat


def _choose_tiling_for_batch(B):
    """Pick (chunks_per_grid_step, grid_steps) from the batch size.

    Targets ~2 grid steps (amortizes the ~600-cycle per-step overhead and keeps
    >=2 steps so v7x can shard the batch axis over its 2 TensorCores), with the
    per-step tile capped so the double-buffered working set stays ~1 MiB.
    """
    rows_per_chunk = 8 * _CHUNK                       # 2048 rows per (8, 256) chunk
    total_chunks = max(2, pl.cdiv(B, rows_per_chunk))
    chunks_per_step = min(_MAX_CHUNKS_PER_STEP, pl.cdiv(total_chunks, 2))
    grid_steps = max(2, pl.cdiv(total_chunks, chunks_per_step))
    return chunks_per_step, grid_steps


def lineal_autoencoder_planes(x4, params, *, chunks_per_step):
    """Layout-native entry point.

    x4: (4, total_chunks, 8, _CHUNK) f32 with the batch folded onto
    (chunks, sublanes, lanes).  Callers that can keep activations in this
    layout avoid the wrapper-side transpose/reshape HBM passes entirely.
    """
    d_in, total_chunks, sub, chunk = x4.shape
    assert d_in == _D_IN and sub == 8 and chunk == _CHUNK
    assert chunk % 128 == 0                     # (8,128) BlockSpec tiling rule
    assert total_chunks % chunks_per_step == 0
    grid_steps = total_chunks // chunks_per_step

    p_flat = pack_params(params)

    return pl.pallas_call(
        autoencoder_kernel,
        out_shape=jax.ShapeDtypeStruct((_D_OUT, total_chunks, 8, _CHUNK), jnp.float32),
        grid=(grid_steps,),
        in_specs=[
            # Single packed weight/bias slab, resident in SMEM (scalar reads).
            pl.BlockSpec(memory_space=pltpu.MemorySpace.SMEM),
            pl.BlockSpec((_D_IN, chunks_per_step, 8, _CHUNK),
                         lambda g: (0, g, 0, 0)),
        ],
        out_specs=pl.BlockSpec((_D_OUT, chunks_per_step, 8, _CHUNK),
                               lambda g: (0, g, 0, 0)),
        # NOTE: if an xprof profile on v7x shows only one TensorCore busy,
        # switch this axis to pltpu.CORE_PARALLEL (grid_steps is kept >= 2 and
        # even-friendly for exactly that reason).
        compiler_params=pltpu.CompilerParams(
            dimension_semantics=("parallel",),
        ),
    )(p_flat, x4)


def lineal_autoencoder(x, params):
    """x: [B, 4] float32.  params: 6 (W, b) pairs in PyTorch (out, in) layout."""
    B, d_in = x.shape
    assert d_in == _D_IN

    chunks_per_step, grid_steps = _choose_tiling_for_batch(B)
    total_chunks = chunks_per_step * grid_steps
    b_pad = total_chunks * 8 * _CHUNK
    if b_pad != B:
        x = jnp.pad(x, ((0, b_pad - B), (0, 0)))

    # Wrapper-side layout plumbing: [B,4] -> [4, chunks, 8, _CHUNK]
    # (batch on chunks+sublanes+lanes).  Kept to pad+transpose+reshape each way;
    # use lineal_autoencoder_planes directly to skip it.
    x4 = x.T.reshape(_D_IN, total_chunks, 8, _CHUNK)

    out4 = lineal_autoencoder_planes(x4, params, chunks_per_step=chunks_per_step)

    out = out4.reshape(_D_OUT, b_pad).T
    return out[:B]


def make_params(key):
    """Deterministic synthetic params matching nn.Linear init, PyTorch (out, in) layout."""
    layer_dims = [(4, 10), (10, 5), (5, 2),   # encoder
                  (2, 5), (5, 10), (10, 4)]   # decoder
    params = []
    for fan_in, fan_out in layer_dims:
        key, kw, kb = jax.random.split(key, 3)
        bound = 1.0 / (fan_in ** 0.5)
        w = jax.random.uniform(kw, (fan_out, fan_in), jnp.float32, -bound, bound)
        b = jax.random.uniform(kb, (fan_out,), jnp.float32, -bound, bound)
        params.append((w, b))
    return params


def reference_forward(x, params):
    """Pure-JAX reference of the 6-layer module."""
    h = x
    relu_after = [True, True, False, True, True, False]
    for (w, b), do_relu in zip(params, relu_after):
        h = h @ w.T + b
        if do_relu:
            h = jnp.maximum(h, 0.0)
    return h


if __name__ == "__main__":
    key = jax.random.PRNGKey(0)
    kx, kp = jax.random.split(key)
    params = make_params(kp)

    # B=8192 -> 4 chunks of 2048 rows, split over 2 grid steps (tile = 2 chunks
    # each): exercises both the >=2-step grid and the multi-chunk inner loop.
    B = 8192
    x = jax.random.normal(kx, (B, 4), dtype=jnp.float32)
    out = jax.block_until_ready(lineal_autoencoder(x, params))
    ref = reference_forward(x, params)
    assert out.shape == (B, 4)
    assert jnp.allclose(out, ref, atol=1e-5, rtol=1e-5)

    # Small ragged batch: exercises the pad-to-minimum-2-steps path.
    B2 = 100
    x2 = jax.random.normal(kx, (B2, 4), dtype=jnp.float32)
    out2 = jax.block_until_ready(lineal_autoencoder(x2, params))
    assert out2.shape == (B2, 4)
    assert jnp.allclose(out2, reference_forward(x2, params), atol=1e-5, rtol=1e-5)

    print("KERNEL_OK")
</pallas_src>

<mosaic_0001>
module attributes {stable_mosaic.version = 11 : i64} {
  func.func @autoencoder_kernel(%arg0: i32, %arg1: memref<236xf32, #tpu.memory_space<smem>>, %arg2: memref<4x2x8x256xf32, #tpu.memory_space<vmem>>, %arg3: memref<4x2x8x256xf32, #tpu.memory_space<vmem>>) attributes {dimension_semantics = [#tpu.dimension_semantics<parallel>], iteration_bounds = array<i64: 2>, scalar_prefetch = 0 : i64, scratch_operands = 0 : i64, tpu.core_type = #tpu.core_type<tc>, window_params = [{transform_indices = @transform_0, window_bounds = array<i64: 236>}, {transform_indices = @transform_1, window_bounds = array<i64: 4, 2, 8, 256>}, {transform_indices = @transform_2, window_bounds = array<i64: 4, 2, 8, 256>}]} {
    %c0 = arith.constant 0 : index
    %0 = memref.load %arg1[%c0] : memref<236xf32, #tpu.memory_space<smem>>
    %c1 = arith.constant 1 : index
    %1 = memref.load %arg1[%c1] : memref<236xf32, #tpu.memory_space<smem>>
    %c2 = arith.constant 2 : index
    %2 = memref.load %arg1[%c2] : memref<236xf32, #tpu.memory_space<smem>>
    %c3 = arith.constant 3 : index
    %3 = memref.load %arg1[%c3] : memref<236xf32, #tpu.memory_space<smem>>
    %c4 = arith.constant 4 : index
    %4 = memref.load %arg1[%c4] : memref<236xf32, #tpu.memory_space<smem>>
    %c5 = arith.constant 5 : index
    %5 = memref.load %arg1[%c5] : memref<236xf32, #tpu.memory_space<smem>>
    %c6 = arith.constant 6 : index
    %6 = memref.load %arg1[%c6] : memref<236xf32, #tpu.memory_space<smem>>
    %c7 = arith.constant 7 : index
    %7 = memref.load %arg1[%c7] : memref<236xf32, #tpu.memory_space<smem>>
    %c8 = arith.constant 8 : index
    %8 = memref.load %arg1[%c8] : memref<236xf32, #tpu.memory_space<smem>>
    %c9 = arith.constant 9 : index
    %9 = memref.load %arg1[%c9] : memref<236xf32, #tpu.memory_space<smem>>
    %c10 = arith.constant 10 : index
    %10 = memref.load %arg1[%c10] : memref<236xf32, #tpu.memory_space<smem>>
    %c11 = arith.constant 11 : index
    %11 = memref.load %arg1[%c11] : memref<236xf32, #tpu.memory_space<smem>>
    %c12 = arith.constant 12 : index
    %12 = memref.load %arg1[%c12] : memref<236xf32, #tpu.memory_space<smem>>
    %c13 = arith.constant 13 : index
    %13 = memref.load %arg1[%c13] : memref<236xf32, #tpu.memory_space<smem>>
    %c14 = arith.constant 14 : index
    %14 = memref.load %arg1[%c14] : memref<236xf32, #tpu.memory_space<smem>>
    %c15 = arith.constant 15 : index
    %15 = memref.load %arg1[%c15] : memref<236xf32, #tpu.memory_space<smem>>
    %c16 = arith.constant 16 : index
    %16 = memref.load %arg1[%c16] : memref<236xf32, #tpu.memory_space<smem>>
    %c17 = arith.constant 17 : index
    %17 = memref.load %arg1[%c17] : memref<236xf32, #tpu.memory_space<smem>>
    %c18 = arith.constant 18 : index
    %18 = memref.load %arg1[%c18] : memref<236xf32, #tpu.memory_space<smem>>
    %c19 = arith.constant 19 : index
    %19 = memref.load %arg1[%c19] : memref<236xf32, #tpu.memory_space<smem>>
    %c20 = arith.constant 20 : index
    %20 = memref.load %arg1[%c20] : memref<236xf32, #tpu.memory_space<smem>>
    %c21 = arith.constant 21 : index
    %21 = memref.load %arg1[%c21] : memref<236xf32, #tpu.memory_space<smem>>
    %c22 = arith.constant 22 : index
    %22 = memref.load %arg1[%c22] : memref<236xf32, #tpu.memory_space<smem>>
    %c23 = arith.constant 23 : index
    %23 = memref.load %arg1[%c23] : memref<236xf32, #tpu.memory_space<smem>>
    %c24 = arith.constant 24 : index
    %24 = memref.load %arg1[%c24] : memref<236xf32, #tpu.memory_space<smem>>
    %c25 = arith.constant 25 : index
    %25 = memref.load %arg1[%c25] : memref<236xf32, #tpu.memory_space<smem>>
    %c26 = arith.constant 26 : index
    %26 = memref.load %arg1[%c26] : memref<236xf32, #tpu.memory_space<smem>>
    %c27 = arith.constant 27 : index
    %27 = memref.load %arg1[%c27] : memref<236xf32, #tpu.memory_space<smem>>
    %c28 = arith.constant 28 : index
    %28 = memref.load %arg1[%c28] : memref<236xf32, #tpu.memory_space<smem>>
    %c29 = arith.constant 29 : index
    %29 = memref.load %arg1[%c29] : memref<236xf32, #tpu.memory_space<smem>>
    %c30 = arith.constant 30 : index
    %30 = memref.load %arg1[%c30] : memref<236xf32, #tpu.memory_space<smem>>
    %c31 = arith.constant 31 : index
    %31 = memref.load %arg1[%c31] : memref<236xf32, #tpu.memory_space<smem>>
    %c32 = arith.constant 32 : index
    %32 = memref.load %arg1[%c32] : memref<236xf32, #tpu.memory_space<smem>>
    %c33 = arith.constant 33 : index
    %33 = memref.load %arg1[%c33] : memref<236xf32, #tpu.memory_space<smem>>
    %c34 = arith.constant 34 : index
    %34 = memref.load %arg1[%c34] : memref<236xf32, #tpu.memory_space<smem>>
    %c35 = arith.constant 35 : index
    %35 = memref.load %arg1[%c35] : memref<236xf32, #tpu.memory_space<smem>>
    %c36 = arith.constant 36 : index
    %36 = memref.load %arg1[%c36] : memref<236xf32, #tpu.memory_space<smem>>
    %c37 = arith.constant 37 : index
    %37 = memref.load %arg1[%c37] : memref<236xf32, #tpu.memory_space<smem>>
    %c38 = arith.constant 38 : index
    %38 = memref.load %arg1[%c38] : memref<236xf32, #tpu.memory_space<smem>>
    %c39 = arith.constant 39 : index
    %39 = memref.load %arg1[%c39] : memref<236xf32, #tpu.memory_space<smem>>
    %c40 = arith.constant 40 : index
    %40 = memref.load %arg1[%c40] : memref<236xf32, #tpu.memory_space<smem>>
    %c41 = arith.constant 41 : index
    %41 = memref.load %arg1[%c41] : memref<236xf32, #tpu.memory_space<smem>>
    %c42 = arith.constant 42 : index
    %42 = memref.load %arg1[%c42] : memref<236xf32, #tpu.memory_space<smem>>
    %c43 = arith.constant 43 : index
    %43 = memref.load %arg1[%c43] : memref<236xf32, #tpu.memory_space<smem>>
    %c44 = arith.constant 44 : index
    %44 = memref.load %arg1[%c44] : memref<236xf32, #tpu.memory_space<smem>>
    %c45 = arith.constant 45 : index
    %45 = memref.load %arg1[%c45] : memref<236xf32, #tpu.memory_space<smem>>
    %c46 = arith.constant 46 : index
    %46 = memref.load %arg1[%c46] : memref<236xf32, #tpu.memory_space<smem>>
    %c47 = arith.constant 47 : index
    %47 = memref.load %arg1[%c47] : memref<236xf32, #tpu.memory_space<smem>>
    %c48 = arith.constant 48 : index
    %48 = memref.load %arg1[%c48] : memref<236xf32, #tpu.memory_space<smem>>
    %c49 = arith.constant 49 : index
    %49 = memref.load %arg1[%c49] : memref<236xf32, #tpu.memory_space<smem>>
    %c50 = arith.constant 50 : index
    %50 = memref.load %arg1[%c50] : memref<236xf32, #tpu.memory_space<smem>>
    %c51 = arith.constant 51 : index
    %51 = memref.load %arg1[%c51] : memref<236xf32, #tpu.memory_space<smem>>
    %c52 = arith.constant 52 : index
    %52 = memref.load %arg1[%c52] : memref<236xf32, #tpu.memory_space<smem>>
    %c53 = arith.constant 53 : index
    %53 = memref.load %arg1[%c53] : memref<236xf32, #tpu.memory_space<smem>>
    %c54 = arith.constant 54 : index
    %54 = memref.load %arg1[%c54] : memref<236xf32, #tpu.memory_space<smem>>
    %c55 = arith.constant 55 : index
    %55 = memref.load %arg1[%c55] : memref<236xf32, #tpu.memory_space<smem>>
    %c56 = arith.constant 56 : index
    %56 = memref.load %arg1[%c56] : memref<236xf32, #tpu.memory_space<smem>>
    %c57 = arith.constant 57 : index
    %57 = memref.load %arg1[%c57] : memref<236xf32, #tpu.memory_space<smem>>
    %c58 = arith.constant 58 : index
    %58 = memref.load %arg1[%c58] : memref<236xf32, #tpu.memory_space<smem>>
    %c59 = arith.constant 59 : index
    %59 = memref.load %arg1[%c59] : memref<236xf32, #tpu.memory_space<smem>>
    %c60 = arith.constant 60 : index
    %60 = memref.load %arg1[%c60] : memref<236xf32, #tpu.memory_space<smem>>
    %c61 = arith.constant 61 : index
    %61 = memref.load %arg1[%c61] : memref<236xf32, #tpu.memory_space<smem>>
    %c62 = arith.constant 62 : index
    %62 = memref.load %arg1[%c62] : memref<236xf32, #tpu.memory_space<smem>>
    %c63 = arith.constant 63 : index
    %63 = memref.load %arg1[%c63] : memref<236xf32, #tpu.memory_space<smem>>
    %c64 = arith.constant 64 : index
    %64 = memref.load %arg1[%c64] : memref<236xf32, #tpu.memory_space<smem>>
    %c65 = arith.constant 65 : index
    %65 = memref.load %arg1[%c65] : memref<236xf32, #tpu.memory_space<smem>>
    %c66 = arith.constant 66 : index
    %66 = memref.load %arg1[%c66] : memref<236xf32, #tpu.memory_space<smem>>
    %c67 = arith.constant 67 : index
    %67 = memref.load %arg1[%c67] : memref<236xf32, #tpu.memory_space<smem>>
    %c68 = arith.constant 68 : index
    %68 = memref.load %arg1[%c68] : memref<236xf32, #tpu.memory_space<smem>>
    %c69 = arith.constant 69 : index
    %69 = memref.load %arg1[%c69] : memref<236xf32, #tpu.memory_space<smem>>
    %c70 = arith.constant 70 : index
    %70 = memref.load %arg1[%c70] : memref<236xf32, #tpu.memory_space<smem>>
    %c71 = arith.constant 71 : index
    %71 = memref.load %arg1[%c71] : memref<236xf32, #tpu.memory_space<smem>>
    %c72 = arith.constant 72 : index
    %72 = memref.load %arg1[%c72] : memref<236xf32, #tpu.memory_space<smem>>
    %c73 = arith.constant 73 : index
    %73 = memref.load %arg1[%c73] : memref<236xf32, #tpu.memory_space<smem>>
    %c74 = arith.constant 74 : index
    %74 = memref.load %arg1[%c74] : memref<236xf32, #tpu.memory_space<smem>>
    %c75 = arith.constant 75 : index
    %75 = memref.load %arg1[%c75] : memref<236xf32, #tpu.memory_space<smem>>
    %c76 = arith.constant 76 : index
    %76 = memref.load %arg1[%c76] : memref<236xf32, #tpu.memory_space<smem>>
    %c77 = arith.constant 77 : index
    %77 = memref.load %arg1[%c77] : memref<236xf32, #tpu.memory_space<smem>>
    %c78 = arith.constant 78 : index
    %78 = memref.load %arg1[%c78] : memref<236xf32, #tpu.memory_space<smem>>
    %c79 = arith.constant 79 : index
    %79 = memref.load %arg1[%c79] : memref<236xf32, #tpu.memory_space<smem>>
    %c80 = arith.constant 80 : index
    %80 = memref.load %arg1[%c80] : memref<236xf32, #tpu.memory_space<smem>>
    %c81 = arith.constant 81 : index
    %81 = memref.load %arg1[%c81] : memref<236xf32, #tpu.memory_space<smem>>
    %c82 = arith.constant 82 : index
    %82 = memref.load %arg1[%c82] : memref<236xf32, #tpu.memory_space<smem>>
    %c83 = arith.constant 83 : index
    %83 = memref.load %arg1[%c83] : memref<236xf32, #tpu.memory_space<smem>>
    %c84 = arith.constant 84 : index
    %84 = memref.load %arg1[%c84] : memref<236xf32, #tpu.memory_space<smem>>
    %c85 = arith.constant 85 : index
    %85 = memref.load %arg1[%c85] : memref<236xf32, #tpu.memory_space<smem>>
    %c86 = arith.constant 86 : index
    %86 = memref.load %arg1[%c86] : memref<236xf32, #tpu.memory_space<smem>>
    %c87 = arith.constant 87 : index
    %87 = memref.load %arg1[%c87] : memref<236xf32, #tpu.memory_space<smem>>
    %c88 = arith.constant 88 : index
    %88 = memref.load %arg1[%c88] : memref<236xf32, #tpu.memory_space<smem>>
    %c89 = arith.constant 89 : index
    %89 = memref.load %arg1[%c89] : memref<236xf32, #tpu.memory_space<smem>>
    %c90 = arith.constant 90 : index
    %90 = memref.load %arg1[%c90] : memref<236xf32, #tpu.memory_space<smem>>
    %c91 = arith.constant 91 : index
    %91 = memref.load %arg1[%c91] : memref<236xf32, #tpu.memory_space<smem>>
    %c92 = arith.constant 92 : index
    %92 = memref.load %arg1[%c92] : memref<236xf32, #tpu.memory_space<smem>>
    %c93 = arith.constant 93 : index
    %93 = memref.load %arg1[%c93] : memref<236xf32, #tpu.memory_space<smem>>
    %c94 = arith.constant 94 : index
    %94 = memref.load %arg1[%c94] : memref<236xf32, #tpu.memory_space<smem>>
    %c95 = arith.constant 95 : index
    %95 = memref.load %arg1[%c95] : memref<236xf32, #tpu.memory_space<smem>>
    %c96 = arith.constant 96 : index
    %96 = memref.load %arg1[%c96] : memref<236xf32, #tpu.memory_space<smem>>
    %c97 = arith.constant 97 : index
    %97 = memref.load %arg1[%c97] : memref<236xf32, #tpu.memory_space<smem>>
    %c98 = arith.constant 98 : index
    %98 = memref.load %arg1[%c98] : memref<236xf32, #tpu.memory_space<smem>>
    %c99 = arith.constant 99 : index
    %99 = memref.load %arg1[%c99] : memref<236xf32, #tpu.memory_space<smem>>
    %c100 = arith.constant 100 : index
    %100 = memref.load %arg1[%c100] : memref<236xf32, #tpu.memory_space<smem>>
    %c101 = arith.constant 101 : index
    %101 = memref.load %arg1[%c101] : memref<236xf32, #tpu.memory_space<smem>>
    %c102 = arith.constant 102 : index
    %102 = memref.load %arg1[%c102] : memref<236xf32, #tpu.memory_space<smem>>
    %c103 = arith.constant 103 : index
    %103 = memref.load %arg1[%c103] : memref<236xf32, #tpu.memory_space<smem>>
    %c104 = arith.constant 104 : index
    %104 = memref.load %arg1[%c104] : memref<236xf32, #tpu.memory_space<smem>>
    %c105 = arith.constant 105 : index
    %105 = memref.load %arg1[%c105] : memref<236xf32, #tpu.memory_space<smem>>
    %c106 = arith.constant 106 : index
    %106 = memref.load %arg1[%c106] : memref<236xf32, #tpu.memory_space<smem>>
    %c107 = arith.constant 107 : index
    %107 = memref.load %arg1[%c107] : memref<236xf32, #tpu.memory_space<smem>>
    %c108 = arith.constant 108 : index
    %108 = memref.load %arg1[%c108] : memref<236xf32, #tpu.memory_space<smem>>
    %c109 = arith.constant 109 : index
    %109 = memref.load %arg1[%c109] : memref<236xf32, #tpu.memory_space<smem>>
    %c110 = arith.constant 110 : index
    %110 = memref.load %arg1[%c110] : memref<236xf32, #tpu.memory_space<smem>>
    %c111 = arith.constant 111 : index
    %111 = memref.load %arg1[%c111] : memref<236xf32, #tpu.memory_space<smem>>
    %c112 = arith.constant 112 : index
    %112 = memref.load %arg1[%c112] : memref<236xf32, #tpu.memory_space<smem>>
    %c113 = arith.constant 113 : index
    %113 = memref.load %arg1[%c113] : memref<236xf32, #tpu.memory_space<smem>>
    %c114 = arith.constant 114 : index
    %114 = memref.load %arg1[%c114] : memref<236xf32, #tpu.memory_space<smem>>
    %c115 = arith.constant 115 : index
    %115 = memref.load %arg1[%c115] : memref<236xf32, #tpu.memory_space<smem>>
    %c116 = arith.constant 116 : index
    %116 = memref.load %arg1[%c116] : memref<236xf32, #tpu.memory_space<smem>>
    %c117 = arith.constant 117 : index
    %117 = memref.load %arg1[%c117] : memref<236xf32, #tpu.memory_space<smem>>
    %c118 = arith.constant 118 : index
    %118 = memref.load %arg1[%c118] : memref<236xf32, #tpu.memory_space<smem>>
    %c119 = arith.constant 119 : index
    %119 = memref.load %arg1[%c119] : memref<236xf32, #tpu.memory_space<smem>>
    %c120 = arith.constant 120 : index
    %120 = memref.load %arg1[%c120] : memref<236xf32, #tpu.memory_space<smem>>
    %c121 = arith.constant 121 : index
    %121 = memref.load %arg1[%c121] : memref<236xf32, #tpu.memory_space<smem>>
    %c122 = arith.constant 122 : index
    %122 = memref.load %arg1[%c122] : memref<236xf32, #tpu.memory_space<smem>>
    %c123 = arith.constant 123 : index
    %123 = memref.load %arg1[%c123] : memref<236xf32, #tpu.memory_space<smem>>
    %c124 = arith.constant 124 : index
    %124 = memref.load %arg1[%c124] : memref<236xf32, #tpu.memory_space<smem>>
    %c125 = arith.constant 125 : index
    %125 = memref.load %arg1[%c125] : memref<236xf32, #tpu.memory_space<smem>>
    %c126 = arith.constant 126 : index
    %126 = memref.load %arg1[%c126] : memref<236xf32, #tpu.memory_space<smem>>
    %c127 = arith.constant 127 : index
    %127 = memref.load %arg1[%c127] : memref<236xf32, #tpu.memory_space<smem>>
    %c128 = arith.constant 128 : index
    %128 = memref.load %arg1[%c128] : memref<236xf32, #tpu.memory_space<smem>>
    %c129 = arith.constant 129 : index
    %129 = memref.load %arg1[%c129] : memref<236xf32, #tpu.memory_space<smem>>
    %c130 = arith.constant 130 : index
    %130 = memref.load %arg1[%c130] : memref<236xf32, #tpu.memory_space<smem>>
    %c131 = arith.constant 131 : index
    %131 = memref.load %arg1[%c131] : memref<236xf32, #tpu.memory_space<smem>>
    %c132 = arith.constant 132 : index
    %132 = memref.load %arg1[%c132] : memref<236xf32, #tpu.memory_space<smem>>
    %c133 = arith.constant 133 : index
    %133 = memref.load %arg1[%c133] : memref<236xf32, #tpu.memory_space<smem>>
    %c134 = arith.constant 134 : index
    %134 = memref.load %arg1[%c134] : memref<236xf32, #tpu.memory_space<smem>>
    %c135 = arith.constant 135 : index
    %135 = memref.load %arg1[%c135] : memref<236xf32, #tpu.memory_space<smem>>
    %c136 = arith.constant 136 : index
    %136 = memref.load %arg1[%c136] : memref<236xf32, #tpu.memory_space<smem>>
    %c137 = arith.constant 137 : index
    %137 = memref.load %arg1[%c137] : memref<236xf32, #tpu.memory_space<smem>>
    %c138 = arith.constant 138 : index
    %138 = memref.load %arg1[%c138] : memref<236xf32, #tpu.memory_space<smem>>
    %c139 = arith.constant 139 : index
    %139 = memref.load %arg1[%c139] : memref<236xf32, #tpu.memory_space<smem>>
    %c140 = arith.constant 140 : index
    %140 = memref.load %arg1[%c140] : memref<236xf32, #tpu.memory_space<smem>>
    %c141 = arith.constant 141 : index
    %141 = memref.load %arg1[%c141] : memref<236xf32, #tpu.memory_space<smem>>
    %c142 = arith.constant 142 : index
    %142 = memref.load %arg1[%c142] : memref<236xf32, #tpu.memory_space<smem>>
    %c143 = arith.constant 143 : index
    %143 = memref.load %arg1[%c143] : memref<236xf32, #tpu.memory_space<smem>>
    %c144 = arith.constant 144 : index
    %144 = memref.load %arg1[%c144] : memref<236xf32, #tpu.memory_space<smem>>
    %c145 = arith.constant 145 : index
    %145 = memref.load %arg1[%c145] : memref<236xf32, #tpu.memory_space<smem>>
    %c146 = arith.constant 146 : index
    %146 = memref.load %arg1[%c146] : memref<236xf32, #tpu.memory_space<smem>>
    %c147 = arith.constant 147 : index
    %147 = memref.load %arg1[%c147] : memref<236xf32, #tpu.memory_space<smem>>
    %c148 = arith.constant 148 : index
    %148 = memref.load %arg1[%c148] : memref<236xf32, #tpu.memory_space<smem>>
    %c149 = arith.constant 149 : index
    %149 = memref.load %arg1[%c149] : memref<236xf32, #tpu.memory_space<smem>>
    %c150 = arith.constant 150 : index
    %150 = memref.load %arg1[%c150] : memref<236xf32, #tpu.memory_space<smem>>
    %c151 = arith.constant 151 : index
    %151 = memref.load %arg1[%c151] : memref<236xf32, #tpu.memory_space<smem>>
    %c152 = arith.constant 152 : index
    %152 = memref.load %arg1[%c152] : memref<236xf32, #tpu.memory_space<smem>>
    %c153 = arith.constant 153 : index
    %153 = memref.load %arg1[%c153] : memref<236xf32, #tpu.memory_space<smem>>
    %c154 = arith.constant 154 : index
    %154 = memref.load %arg1[%c154] : memref<236xf32, #tpu.memory_space<smem>>
    %c155 = arith.constant 155 : index
    %155 = memref.load %arg1[%c155] : memref<236xf32, #tpu.memory_space<smem>>
    %c156 = arith.constant 156 : index
    %156 = memref.load %arg1[%c156] : memref<236xf32, #tpu.memory_space<smem>>
    %c157 = arith.constant 157 : index
    %157 = memref.load %arg1[%c157] : memref<236xf32, #tpu.memory_space<smem>>
    %c158 = arith.constant 158 : index
    %158 = memref.load %arg1[%c158] : memref<236xf32, #tpu.memory_space<smem>>
    %c159 = arith.constant 159 : index
    %159 = memref.load %arg1[%c159] : memref<236xf32, #tpu.memory_space<smem>>
    %c160 = arith.constant 160 : index
    %160 = memref.load %arg1[%c160] : memref<236xf32, #tpu.memory_space<smem>>
    %c161 = arith.constant 161 : index
    %161 = memref.load %arg1[%c161] : memref<236xf32, #tpu.memory_space<smem>>
    %c162 = arith.constant 162 : index
    %162 = memref.load %arg1[%c162] : memref<236xf32, #tpu.memory_space<smem>>
    %c163 = arith.constant 163 : index
    %163 = memref.load %arg1[%c163] : memref<236xf32, #tpu.memory_space<smem>>
    %c164 = arith.constant 164 : index
    %164 = memref.load %arg1[%c164] : memref<236xf32, #tpu.memory_space<smem>>
    %c165 = arith.constant 165 : index
    %165 = memref.load %arg1[%c165] : memref<236xf32, #tpu.memory_space<smem>>
    %c166 = arith.constant 166 : index
    %166 = memref.load %arg1[%c166] : memref<236xf32, #tpu.memory_space<smem>>
    %c167 = arith.constant 167 : index
    %167 = memref.load %arg1[%c167] : memref<236xf32, #tpu.memory_space<smem>>
    %c168 = arith.constant 168 : index
    %168 = memref.load %arg1[%c168] : memref<236xf32, #tpu.memory_space<smem>>
    %c169 = arith.constant 169 : index
    %169 = memref.load %arg1[%c169] : memref<236xf32, #tpu.memory_space<smem>>
    %c170 = arith.constant 170 : index
    %170 = memref.load %arg1[%c170] : memref<236xf32, #tpu.memory_space<smem>>
    %c171 = arith.constant 171 : index
    %171 = memref.load %arg1[%c171] : memref<236xf32, #tpu.memory_space<smem>>
    %c172 = arith.constant 172 : index
    %172 = memref.load %arg1[%c172] : memref<236xf32, #tpu.memory_space<smem>>
    %c173 = arith.constant 173 : index
    %173 = memref.load %arg1[%c173] : memref<236xf32, #tpu.memory_space<smem>>
    %c174 = arith.constant 174 : index
    %174 = memref.load %arg1[%c174] : memref<236xf32, #tpu.memory_space<smem>>
    %c175 = arith.constant 175 : index
    %175 = memref.load %arg1[%c175] : memref<236xf32, #tpu.memory_space<smem>>
    %c176 = arith.constant 176 : index
    %176 = memref.load %arg1[%c176] : memref<236xf32, #tpu.memory_space<smem>>
    %c177 = arith.constant 177 : index
    %177 = memref.load %arg1[%c177] : memref<236xf32, #tpu.memory_space<smem>>
    %c178 = arith.constant 178 : index
    %178 = memref.load %arg1[%c178] : memref<236xf32, #tpu.memory_space<smem>>
    %c179 = arith.constant 179 : index
    %179 = memref.load %arg1[%c179] : memref<236xf32, #tpu.memory_space<smem>>
    %c180 = arith.constant 180 : index
    %180 = memref.load %arg1[%c180] : memref<236xf32, #tpu.memory_space<smem>>
    %c181 = arith.constant 181 : index
    %181 = memref.load %arg1[%c181] : memref<236xf32, #tpu.memory_space<smem>>
    %c182 = arith.constant 182 : index
    %182 = memref.load %arg1[%c182] : memref<236xf32, #tpu.memory_space<smem>>
    %c183 = arith.constant 183 : index
    %183 = memref.load %arg1[%c183] : memref<236xf32, #tpu.memory_space<smem>>
    %c184 = arith.constant 184 : index
    %184 = memref.load %arg1[%c184] : memref<236xf32, #tpu.memory_space<smem>>
    %c185 = arith.constant 185 : index
    %185 = memref.load %arg1[%c185] : memref<236xf32, #tpu.memory_space<smem>>
    %c186 = arith.constant 186 : index
    %186 = memref.load %arg1[%c186] : memref<236xf32, #tpu.memory_space<smem>>
    %c187 = arith.constant 187 : index
    %187 = memref.load %arg1[%c187] : memref<236xf32, #tpu.memory_space<smem>>
    %c188 = arith.constant 188 : index
    %188 = memref.load %arg1[%c188] : memref<236xf32, #tpu.memory_space<smem>>
    %c189 = arith.constant 189 : index
    %189 = memref.load %arg1[%c189] : memref<236xf32, #tpu.memory_space<smem>>
    %c190 = arith.constant 190 : index
    %190 = memref.load %arg1[%c190] : memref<236xf32, #tpu.memory_space<smem>>
    %c191 = arith.constant 191 : index
    %191 = memref.load %arg1[%c191] : memref<236xf32, #tpu.memory_space<smem>>
    %c192 = arith.constant 192 : index
    %192 = memref.load %arg1[%c192] : memref<236xf32, #tpu.memory_space<smem>>
    %c193 = arith.constant 193 : index
    %193 = memref.load %arg1[%c193] : memref<236xf32, #tpu.memory_space<smem>>
    %c194 = arith.constant 194 : index
    %194 = memref.load %arg1[%c194] : memref<236xf32, #tpu.memory_space<smem>>
    %c195 = arith.constant 195 : index
    %195 = memref.load %arg1[%c195] : memref<236xf32, #tpu.memory_space<smem>>
    %c196 = arith.constant 196 : index
    %196 = memref.load %arg1[%c196] : memref<236xf32, #tpu.memory_space<smem>>
    %c197 = arith.constant 197 : index
    %197 = memref.load %arg1[%c197] : memref<236xf32, #tpu.memory_space<smem>>
    %c198 = arith.constant 198 : index
    %198 = memref.load %arg1[%c198] : memref<236xf32, #tpu.memory_space<smem>>
    %c199 = arith.constant 199 : index
    %199 = memref.load %arg1[%c199] : memref<236xf32, #tpu.memory_space<smem>>
    %c200 = arith.constant 200 : index
    %200 = memref.load %arg1[%c200] : memref<236xf32, #tpu.memory_space<smem>>
    %c201 = arith.constant 201 : index
    %201 = memref.load %arg1[%c201] : memref<236xf32, #tpu.memory_space<smem>>
    %c202 = arith.constant 202 : index
    %202 = memref.load %arg1[%c202] : memref<236xf32, #tpu.memory_space<smem>>
    %c203 = arith.constant 203 : index
    %203 = memref.load %arg1[%c203] : memref<236xf32, #tpu.memory_space<smem>>
    %c204 = arith.constant 204 : index
    %204 = memref.load %arg1[%c204] : memref<236xf32, #tpu.memory_space<smem>>
    %c205 = arith.constant 205 : index
    %205 = memref.load %arg1[%c205] : memref<236xf32, #tpu.memory_space<smem>>
    %c206 = arith.constant 206 : index
    %206 = memref.load %arg1[%c206] : memref<236xf32, #tpu.memory_space<smem>>
    %c207 = arith.constant 207 : index
    %207 = memref.load %arg1[%c207] : memref<236xf32, #tpu.memory_space<smem>>
    %c208 = arith.constant 208 : index
    %208 = memref.load %arg1[%c208] : memref<236xf32, #tpu.memory_space<smem>>
    %c209 = arith.constant 209 : index
    %209 = memref.load %arg1[%c209] : memref<236xf32, #tpu.memory_space<smem>>
    %c210 = arith.constant 210 : index
    %210 = memref.load %arg1[%c210] : memref<236xf32, #tpu.memory_space<smem>>
    %c211 = arith.constant 211 : index
    %211 = memref.load %arg1[%c211] : memref<236xf32, #tpu.memory_space<smem>>
    %c212 = arith.constant 212 : index
    %212 = memref.load %arg1[%c212] : memref<236xf32, #tpu.memory_space<smem>>
    %c213 = arith.constant 213 : index
    %213 = memref.load %arg1[%c213] : memref<236xf32, #tpu.memory_space<smem>>
    %c214 = arith.constant 214 : index
    %214 = memref.load %arg1[%c214] : memref<236xf32, #tpu.memory_space<smem>>
    %c215 = arith.constant 215 : index
    %215 = memref.load %arg1[%c215] : memref<236xf32, #tpu.memory_space<smem>>
    %c216 = arith.constant 216 : index
    %216 = memref.load %arg1[%c216] : memref<236xf32, #tpu.memory_space<smem>>
    %c217 = arith.constant 217 : index
    %217 = memref.load %arg1[%c217] : memref<236xf32, #tpu.memory_space<smem>>
    %c218 = arith.constant 218 : index
    %218 = memref.load %arg1[%c218] : memref<236xf32, #tpu.memory_space<smem>>
    %c219 = arith.constant 219 : index
    %219 = memref.load %arg1[%c219] : memref<236xf32, #tpu.memory_space<smem>>
    %c220 = arith.constant 220 : index
    %220 = memref.load %arg1[%c220] : memref<236xf32, #tpu.memory_space<smem>>
    %c221 = arith.constant 221 : index
    %221 = memref.load %arg1[%c221] : memref<236xf32, #tpu.memory_space<smem>>
    %c222 = arith.constant 222 : index
    %222 = memref.load %arg1[%c222] : memref<236xf32, #tpu.memory_space<smem>>
    %c223 = arith.constant 223 : index
    %223 = memref.load %arg1[%c223] : memref<236xf32, #tpu.memory_space<smem>>
    %c224 = arith.constant 224 : index
    %224 = memref.load %arg1[%c224] : memref<236xf32, #tpu.memory_space<smem>>
    %c225 = arith.constant 225 : index
    %225 = memref.load %arg1[%c225] : memref<236xf32, #tpu.memory_space<smem>>
    %c226 = arith.constant 226 : index
    %226 = memref.load %arg1[%c226] : memref<236xf32, #tpu.memory_space<smem>>
    %c227 = arith.constant 227 : index
    %227 = memref.load %arg1[%c227] : memref<236xf32, #tpu.memory_space<smem>>
    %c228 = arith.constant 228 : index
    %228 = memref.load %arg1[%c228] : memref<236xf32, #tpu.memory_space<smem>>
    %c229 = arith.constant 229 : index
    %229 = memref.load %arg1[%c229] : memref<236xf32, #tpu.memory_space<smem>>
    %c230 = arith.constant 230 : index
    %230 = memref.load %arg1[%c230] : memref<236xf32, #tpu.memory_space<smem>>
    %c231 = arith.constant 231 : index
    %231 = memref.load %arg1[%c231] : memref<236xf32, #tpu.memory_space<smem>>
    %c232 = arith.constant 232 : index
    %232 = memref.load %arg1[%c232] : memref<236xf32, #tpu.memory_space<smem>>
    %c233 = arith.constant 233 : index
    %233 = memref.load %arg1[%c233] : memref<236xf32, #tpu.memory_space<smem>>
    %c234 = arith.constant 234 : index
    %234 = memref.load %arg1[%c234] : memref<236xf32, #tpu.memory_space<smem>>
    %c235 = arith.constant 235 : index
    %235 = memref.load %arg1[%c235] : memref<236xf32, #tpu.memory_space<smem>>
    %c0_i32 = arith.constant 0 : i32
    %c2_i32 = arith.constant 2 : i32
    %236 = arith.addi %c0_i32, %c2_i32 : i32
    %c1_i32 = arith.constant 1 : i32
    scf.for %arg4 = %c0_i32 to %236 step %c1_i32  : i32 {
      %c0_1 = arith.constant 0 : index
      %237 = arith.index_cast %arg4 : i32 to index
      %c0_2 = arith.constant 0 : index
      %c0_3 = arith.constant 0 : index
      %238 = vector.load %arg2[%c0_1, %237, %c0_2, %c0_3] : memref<4x2x8x256xf32, #tpu.memory_space<vmem>>, vector<1x1x8x256xf32>
      %239 = vector.shape_cast %238 : vector<1x1x8x256xf32> to vector<8x256xf32>
      %c1_4 = arith.constant 1 : index
      %240 = arith.index_cast %arg4 : i32 to index
      %c0_5 = arith.constant 0 : index
      %c0_6 = arith.constant 0 : index
      %241 = vector.load %arg2[%c1_4, %240, %c0_5, %c0_6] : memref<4x2x8x256xf32, #tpu.memory_space<vmem>>, vector<1x1x8x256xf32>
      %242 = vector.shape_cast %241 : vector<1x1x8x256xf32> to vector<8x256xf32>
      %c2_7 = arith.constant 2 : index
      %243 = arith.index_cast %arg4 : i32 to index
      %c0_8 = arith.constant 0 : index
      %c0_9 = arith.constant 0 : index
      %244 = vector.load %arg2[%c2_7, %243, %c0_8, %c0_9] : memref<4x2x8x256xf32, #tpu.memory_space<vmem>>, vector<1x1x8x256xf32>
      %245 = vector.shape_cast %244 : vector<1x1x8x256xf32> to vector<8x256xf32>
      %c3_10 = arith.constant 3 : index
      %246 = arith.index_cast %arg4 : i32 to index
      %c0_11 = arith.constant 0 : index
      %c0_12 = arith.constant 0 : index
      %247 = vector.load %arg2[%c3_10, %246, %c0_11, %c0_12] : memref<4x2x8x256xf32, #tpu.memory_space<vmem>>, vector<1x1x8x256xf32>
      %248 = vector.shape_cast %247 : vector<1x1x8x256xf32> to vector<8x256xf32>
      %249 = vector.broadcast %0 : f32 to vector<8x256xf32>
      %250 = arith.mulf %239, %249 : vector<8x256xf32>
      %251 = vector.broadcast %1 : f32 to vector<8x256xf32>
      %252 = arith.mulf %242, %251 : vector<8x256xf32>
      %253 = arith.addf %250, %252 : vector<8x256xf32>
      %254 = vector.broadcast %2 : f32 to vector<8x256xf32>
      %255 = arith.mulf %245, %254 : vector<8x256xf32>
      %256 = arith.addf %253, %255 : vector<8x256xf32>
      %257 = vector.broadcast %3 : f32 to vector<8x256xf32>
      %258 = arith.mulf %248, %257 : vector<8x256xf32>
      %259 = arith.addf %256, %258 : vector<8x256xf32>
      %260 = vector.broadcast %40 : f32 to vector<8x256xf32>
      %261 = arith.addf %259, %260 : vector<8x256xf32>
      %cst = arith.constant 0.000000e+00 : f32
      %262 = vector.broadcast %cst : f32 to vector<8x256xf32>
      %263 = arith.maximumf %261, %262 : vector<8x256xf32>
      %264 = vector.broadcast %4 : f32 to vector<8x256xf32>
      %265 = arith.mulf %239, %264 : vector<8x256xf32>
      %266 = vector.broadcast %5 : f32 to vector<8x256xf32>
      %267 = arith.mulf %242, %266 : vector<8x256xf32>
      %268 = arith.addf %265, %267 : vector<8x256xf32>
      %269 = vector.broadcast %6 : f32 to vector<8x256xf32>
      %270 = arith.mulf %245, %269 : vector<8x256xf32>
      %271 = arith.addf %268, %270 : vector<8x256xf32>
      %272 = vector.broadcast %7 : f32 to vector<8x256xf32>
      %273 = arith.mulf %248, %272 : vector<8x256xf32>
      %274 = arith.addf %271, %273 : vector<8x256xf32>
      %275 = vector.broadcast %41 : f32 to vector<8x256xf32>
      %276 = arith.addf %274, %275 : vector<8x256xf32>
      %cst_13 = arith.constant 0.000000e+00 : f32
      %277 = vector.broadcast %cst_13 : f32 to vector<8x256xf32>
      %278 = arith.maximumf %276, %277 : vector<8x256xf32>
      %279 = vector.broadcast %8 : f32 to vector<8x256xf32>
      %280 = arith.mulf %239, %279 : vector<8x256xf32>
      %281 = vector.broadcast %9 : f32 to vector<8x256xf32>
      %282 = arith.mulf %242, %281 : vector<8x256xf32>
      %283 = arith.addf %280, %282 : vector<8x256xf32>
      %284 = vector.broadcast %10 : f32 to vector<8x256xf32>
      %285 = arith.mulf %245, %284 : vector<8x256xf32>
      %286 = arith.addf %283, %285 : vector<8x256xf32>
      %287 = vector.broadcast %11 : f32 to vector<8x256xf32>
      %288 = arith.mulf %248, %287 : vector<8x256xf32>
      %289 = arith.addf %286, %288 : vector<8x256xf32>
      %290 = vector.broadcast %42 : f32 to vector<8x256xf32>
      %291 = arith.addf %289, %290 : vector<8x256xf32>
      %cst_14 = arith.constant 0.000000e+00 : f32
      %292 = vector.broadcast %cst_14 : f32 to vector<8x256xf32>
      %293 = arith.maximumf %291, %292 : vector<8x256xf32>
      %294 = vector.broadcast %12 : f32 to vector<8x256xf32>
      %295 = arith.mulf %239, %294 : vector<8x256xf32>
      %296 = vector.broadcast %13 : f32 to vector<8x256xf32>
      %297 = arith.mulf %242, %296 : vector<8x256xf32>
      %298 = arith.addf %295, %297 : vector<8x256xf32>
      %299 = vector.broadcast %14 : f32 to vector<8x256xf32>
      %300 = arith.mulf %245, %299 : vector<8x256xf32>
      %301 = arith.addf %298, %300 : vector<8x256xf32>
      %302 = vector.broadcast %15 : f32 to vector<8x256xf32>
      %303 = arith.mulf %248, %302 : vector<8x256xf32>
      %304 = arith.addf %301, %303 : vector<8x256xf32>
      %305 = vector.broadcast %43 : f32 to vector<8x256xf32>
      %306 = arith.addf %304, %305 : vector<8x256xf32>
      %cst_15 = arith.constant 0.000000e+00 : f32
      %307 = vector.broadcast %cst_15 : f32 to vector<8x256xf32>
      %308 = arith.maximumf %306, %307 : vector<8x256xf32>
      %309 = vector.broadcast %16 : f32 to vector<8x256xf32>
      %310 = arith.mulf %239, %309 : vector<8x256xf32>
      %311 = vector.broadcast %17 : f32 to vector<8x256xf32>
      %312 = arith.mulf %242, %311 : vector<8x256xf32>
      %313 = arith.addf %310, %312 : vector<8x256xf32>
      %314 = vector.broadcast %18 : f32 to vector<8x256xf32>
      %315 = arith.mulf %245, %314 : vector<8x256xf32>
      %316 = arith.addf %313, %315 : vector<8x256xf32>
      %317 = vector.broadcast %19 : f32 to vector<8x256xf32>
      %318 = arith.mulf %248, %317 : vector<8x256xf32>
      %319 = arith.addf %316, %318 : vector<8x256xf32>
      %320 = vector.broadcast %44 : f32 to vector<8x256xf32>
      %321 = arith.addf %319, %320 : vector<8x256xf32>
      %cst_16 = arith.constant 0.000000e+00 : f32
      %322 = vector.broadcast %cst_16 : f32 to vector<8x256xf32>
      %323 = arith.maximumf %321, %322 : vector<8x256xf32>
      %324 = vector.broadcast %20 : f32 to vector<8x256xf32>
      %325 = arith.mulf %239, %324 : vector<8x256xf32>
      %326 = vector.broadcast %21 : f32 to vector<8x256xf32>
      %327 = arith.mulf %242, %326 : vector<8x256xf32>
      %328 = arith.addf %325, %327 : vector<8x256xf32>
      %329 = vector.broadcast %22 : f32 to vector<8x256xf32>
      %330 = arith.mulf %245, %329 : vector<8x256xf32>
      %331 = arith.addf %328, %330 : vector<8x256xf32>
      %332 = vector.broadcast %23 : f32 to vector<8x256xf32>
      %333 = arith.mulf %248, %332 : vector<8x256xf32>
      %334 = arith.addf %331, %333 : vector<8x256xf32>
      %335 = vector.broadcast %45 : f32 to vector<8x256xf32>
      %336 = arith.addf %334, %335 : vector<8x256xf32>
      %cst_17 = arith.constant 0.000000e+00 : f32
      %337 = vector.broadcast %cst_17 : f32 to vector<8x256xf32>
      %338 = arith.maximumf %336, %337 : vector<8x256xf32>
      %339 = vector.broadcast %24 : f32 to vector<8x256xf32>
      %340 = arith.mulf %239, %339 : vector<8x256xf32>
      %341 = vector.broadcast %25 : f32 to vector<8x256xf32>
      %342 = arith.mulf %242, %341 : vector<8x256xf32>
      %343 = arith.addf %340, %342 : vector<8x256xf32>
      %344 = vector.broadcast %26 : f32 to vector<8x256xf32>
      %345 = arith.mulf %245, %344 : vector<8x256xf32>
      %346 = arith.addf %343, %345 : vector<8x256xf32>
      %347 = vector.broadcast %27 : f32 to vector<8x256xf32>
      %348 = arith.mulf %248, %347 : vector<8x256xf32>
      %349 = arith.addf %346, %348 : vector<8x256xf32>
      %350 = vector.broadcast %46 : f32 to vector<8x256xf32>
      %351 = arith.addf %349, %350 : vector<8x256xf32>
      %cst_18 = arith.constant 0.000000e+00 : f32
      %352 = vector.broadcast %cst_18 : f32 to vector<8x256xf32>
      %353 = arith.maximumf %351, %352 : vector<8x256xf32>
      %354 = vector.broadcast %28 : f32 to vector<8x256xf32>
      %355 = arith.mulf %239, %354 : vector<8x256xf32>
      %356 = vector.broadcast %29 : f32 to vector<8x256xf32>
      %357 = arith.mulf %242, %356 : vector<8x256xf32>
      %358 = arith.addf %355, %357 : vector<8x256xf32>
      %359 = vector.broadcast %30 : f32 to vector<8x256xf32>
      %360 = arith.mulf %245, %359 : vector<8x256xf32>
      %361 = arith.addf %358, %360 : vector<8x256xf32>
      %362 = vector.broadcast %31 : f32 to vector<8x256xf32>
      %363 = arith.mulf %248, %362 : vector<8x256xf32>
      %364 = arith.addf %361, %363 : vector<8x256xf32>
      %365 = vector.broadcast %47 : f32 to vector<8x256xf32>
      %366 = arith.addf %364, %365 : vector<8x256xf32>
      %cst_19 = arith.constant 0.000000e+00 : f32
      %367 = vector.broadcast %cst_19 : f32 to vector<8x256xf32>
      %368 = arith.maximumf %366, %367 : vector<8x256xf32>
      %369 = vector.broadcast %32 : f32 to vector<8x256xf32>
      %370 = arith.mulf %239, %369 : vector<8x256xf32>
      %371 = vector.broadcast %33 : f32 to vector<8x256xf32>
      %372 = arith.mulf %242, %371 : vector<8x256xf32>
      %373 = arith.addf %370, %372 : vector<8x256xf32>
      %374 = vector.broadcast %34 : f32 to vector<8x256xf32>
      %375 = arith.mulf %245, %374 : vector<8x256xf32>
      %376 = arith.addf %373, %375 : vector<8x256xf32>
      %377 = vector.broadcast %35 : f32 to vector<8x256xf32>
      %378 = arith.mulf %248, %377 : vector<8x256xf32>
      %379 = arith.addf %376, %378 : vector<8x256xf32>
      %380 = vector.broadcast %48 : f32 to vector<8x256xf32>
      %381 = arith.addf %379, %380 : vector<8x256xf32>
      %cst_20 = arith.constant 0.000000e+00 : f32
      %382 = vector.broadcast %cst_20 : f32 to vector<8x256xf32>
      %383 = arith.maximumf %381, %382 : vector<8x256xf32>
      %384 = vector.broadcast %36 : f32 to vector<8x256xf32>
      %385 = arith.mulf %239, %384 : vector<8x256xf32>
      %386 = vector.broadcast %37 : f32 to vector<8x256xf32>
      %387 = arith.mulf %242, %386 : vector<8x256xf32>
      %388 = arith.addf %385, %387 : vector<8x256xf32>
      %389 = vector.broadcast %38 : f32 to vector<8x256xf32>
      %390 = arith.mulf %245, %389 : vector<8x256xf32>
      %391 = arith.addf %388, %390 : vector<8x256xf32>
      %392 = vector.broadcast %39 : f32 to vector<8x256xf32>
      %393 = arith.mulf %248, %392 : vector<8x256xf32>
      %394 = arith.addf %391, %393 : vector<8x256xf32>
      %395 = vector.broadcast %49 : f32 to vector<8x256xf32>
      %396 = arith.addf %394, %395 : vector<8x256xf32>
      %cst_21 = arith.constant 0.000000e+00 : f32
      %397 = vector.broadcast %cst_21 : f32 to vector<8x256xf32>
      %398 = arith.maximumf %396, %397 : vector<8x256xf32>
      %399 = vector.broadcast %50 : f32 to vector<8x256xf32>
      %400 = arith.mulf %263, %399 : vector<8x256xf32>
      %401 = vector.broadcast %51 : f32 to vector<8x256xf32>
      %402 = arith.mulf %278, %401 : vector<8x256xf32>
      %403 = arith.addf %400, %402 : vector<8x256xf32>
      %404 = vector.broadcast %52 : f32 to vector<8x256xf32>
      %405 = arith.mulf %293, %404 : vector<8x256xf32>
      %406 = arith.addf %403, %405 : vector<8x256xf32>
      %407 = vector.broadcast %53 : f32 to vector<8x256xf32>
      %408 = arith.mulf %308, %407 : vector<8x256xf32>
      %409 = arith.addf %406, %408 : vector<8x256xf32>
      %410 = vector.broadcast %54 : f32 to vector<8x256xf32>
      %411 = arith.mulf %323, %410 : vector<8x256xf32>
      %412 = arith.addf %409, %411 : vector<8x256xf32>
      %413 = vector.broadcast %55 : f32 to vector<8x256xf32>
      %414 = arith.mulf %338, %413 : vector<8x256xf32>
      %415 = arith.addf %412, %414 : vector<8x256xf32>
      %416 = vector.broadcast %56 : f32 to vector<8x256xf32>
      %417 = arith.mulf %353, %416 : vector<8x256xf32>
      %418 = arith.addf %415, %417 : vector<8x256xf32>
      %419 = vector.broadcast %57 : f32 to vector<8x256xf32>
      %420 = arith.mulf %368, %419 : vector<8x256xf32>
      %421 = arith.addf %418, %420 : vector<8x256xf32>
      %422 = vector.broadcast %58 : f32 to vector<8x256xf32>
      %423 = arith.mulf %383, %422 : vector<8x256xf32>
      %424 = arith.addf %421, %423 : vector<8x256xf32>
      %425 = vector.broadcast %59 : f32 to vector<8x256xf32>
      %426 = arith.mulf %398, %425 : vector<8x256xf32>
      %427 = arith.addf %424, %426 : vector<8x256xf32>
      %428 = vector.broadcast %100 : f32 to vector<8x256xf32>
      %429 = arith.addf %427, %428 : vector<8x256xf32>
      %cst_22 = arith.constant 0.000000e+00 : f32
      %430 = vector.broadcast %cst_22 : f32 to vector<8x256xf32>
      %431 = arith.maximumf %429, %430 : vector<8x256xf32>
      %432 = vector.broadcast %60 : f32 to vector<8x256xf32>
      %433 = arith.mulf %263, %432 : vector<8x256xf32>
      %434 = vector.broadcast %61 : f32 to vector<8x256xf32>
      %435 = arith.mulf %278, %434 : vector<8x256xf32>
      %436 = arith.addf %433, %435 : vector<8x256xf32>
      %437 = vector.broadcast %62 : f32 to vector<8x256xf32>
      %438 = arith.mulf %293, %437 : vector<8x256xf32>
      %439 = arith.addf %436, %438 : vector<8x256xf32>
      %440 = vector.broadcast %63 : f32 to vector<8x256xf32>
      %441 = arith.mulf %308, %440 : vector<8x256xf32>
      %442 = arith.addf %439, %441 : vector<8x256xf32>
      %443 = vector.broadcast %64 : f32 to vector<8x256xf32>
      %444 = arith.mulf %323, %443 : vector<8x256xf32>
      %445 = arith.addf %442, %444 : vector<8x256xf32>
      %446 = vector.broadcast %65 : f32 to vector<8x256xf32>
      %447 = arith.mulf %338, %446 : vector<8x256xf32>
      %448 = arith.addf %445, %447 : vector<8x256xf32>
      %449 = vector.broadcast %66 : f32 to vector<8x256xf32>
      %450 = arith.mulf %353, %449 : vector<8x256xf32>
      %451 = arith.addf %448, %450 : vector<8x256xf32>
      %452 = vector.broadcast %67 : f32 to vector<8x256xf32>
      %453 = arith.mulf %368, %452 : vector<8x256xf32>
      %454 = arith.addf %451, %453 : vector<8x256xf32>
      %455 = vector.broadcast %68 : f32 to vector<8x256xf32>
      %456 = arith.mulf %383, %455 : vector<8x256xf32>
      %457 = arith.addf %454, %456 : vector<8x256xf32>
      %458 = vector.broadcast %69 : f32 to vector<8x256xf32>
      %459 = arith.mulf %398, %458 : vector<8x256xf32>
      %460 = arith.addf %457, %459 : vector<8x256xf32>
      %461 = vector.broadcast %101 : f32 to vector<8x256xf32>
      %462 = arith.addf %460, %461 : vector<8x256xf32>
      %cst_23 = arith.constant 0.000000e+00 : f32
      %463 = vector.broadcast %cst_23 : f32 to vector<8x256xf32>
      %464 = arith.maximumf %462, %463 : vector<8x256xf32>
      %465 = vector.broadcast %70 : f32 to vector<8x256xf32>
      %466 = arith.mulf %263, %465 : vector<8x256xf32>
      %467 = vector.broadcast %71 : f32 to vector<8x256xf32>
      %468 = arith.mulf %278, %467 : vector<8x256xf32>
      %469 = arith.addf %466, %468 : vector<8x256xf32>
      %470 = vector.broadcast %72 : f32 to vector<8x256xf32>
      %471 = arith.mulf %293, %470 : vector<8x256xf32>
      %472 = arith.addf %469, %471 : vector<8x256xf32>
      %473 = vector.broadcast %73 : f32 to vector<8x256xf32>
      %474 = arith.mulf %308, %473 : vector<8x256xf32>
      %475 = arith.addf %472, %474 : vector<8x256xf32>
      %476 = vector.broadcast %74 : f32 to vector<8x256xf32>
      %477 = arith.mulf %323, %476 : vector<8x256xf32>
      %478 = arith.addf %475, %477 : vector<8x256xf32>
      %479 = vector.broadcast %75 : f32 to vector<8x256xf32>
      %480 = arith.mulf %338, %479 : vector<8x256xf32>
      %481 = arith.addf %478, %480 : vector<8x256xf32>
      %482 = vector.broadcast %76 : f32 to vector<8x256xf32>
      %483 = arith.mulf %353, %482 : vector<8x256xf32>
      %484 = arith.addf %481, %483 : vector<8x256xf32>
      %485 = vector.broadcast %77 : f32 to vector<8x256xf32>
      %486 = arith.mulf %368, %485 : vector<8x256xf32>
      %487 = arith.addf %484, %486 : vector<8x256xf32>
      %488 = vector.broadcast %78 : f32 to vector<8x256xf32>
      %489 = arith.mulf %383, %488 : vector<8x256xf32>
      %490 = arith.addf %487, %489 : vector<8x256xf32>
      %491 = vector.broadcast %79 : f32 to vector<8x256xf32>
      %492 = arith.mulf %398, %491 : vector<8x256xf32>
      %493 = arith.addf %490, %492 : vector<8x256xf32>
      %494 = vector.broadcast %102 : f32 to vector<8x256xf32>
      %495 = arith.addf %493, %494 : vector<8x256xf32>
      %cst_24 = arith.constant 0.000000e+00 : f32
      %496 = vector.broadcast %cst_24 : f32 to vector<8x256xf32>
      %497 = arith.maximumf %495, %496 : vector<8x256xf32>
      %498 = vector.broadcast %80 : f32 to vector<8x256xf32>
      %499 = arith.mulf %263, %498 : vector<8x256xf32>
      %500 = vector.broadcast %81 : f32 to vector<8x256xf32>
      %501 = arith.mulf %278, %500 : vector<8x256xf32>
      %502 = arith.addf %499, %501 : vector<8x256xf32>
      %503 = vector.broadcast %82 : f32 to vector<8x256xf32>
      %504 = arith.mulf %293, %503 : vector<8x256xf32>
      %505 = arith.addf %502, %504 : vector<8x256xf32>
      %506 = vector.broadcast %83 : f32 to vector<8x256xf32>
      %507 = arith.mulf %308, %506 : vector<8x256xf32>
      %508 = arith.addf %505, %507 : vector<8x256xf32>
      %509 = vector.broadcast %84 : f32 to vector<8x256xf32>
      %510 = arith.mulf %323, %509 : vector<8x256xf32>
      %511 = arith.addf %508, %510 : vector<8x256xf32>
      %512 = vector.broadcast %85 : f32 to vector<8x256xf32>
      %513 = arith.mulf %338, %512 : vector<8x256xf32>
      %514 = arith.addf %511, %513 : vector<8x256xf32>
      %515 = vector.broadcast %86 : f32 to vector<8x256xf32>
      %516 = arith.mulf %353, %515 : vector<8x256xf32>
      %517 = arith.addf %514, %516 : vector<8x256xf32>
      %518 = vector.broadcast %87 : f32 to vector<8x256xf32>
      %519 = arith.mulf %368, %518 : vector<8x256xf32>
      %520 = arith.addf %517, %519 : vector<8x256xf32>
      %521 = vector.broadcast %88 : f32 to vector<8x256xf32>
      %522 = arith.mulf %383, %521 : vector<8x256xf32>
      %523 = arith.addf %520, %522 : vector<8x256xf32>
      %524 = vector.broadcast %89 : f32 to vector<8x256xf32>
      %525 = arith.mulf %398, %524 : vector<8x256xf32>
      %526 = arith.addf %523, %525 : vector<8x256xf32>
      %527 = vector.broadcast %103 : f32 to vector<8x256xf32>
      %528 = arith.addf %526, %527 : vector<8x256xf32>
      %cst_25 = arith.constant 0.000000e+00 : f32
      %529 = vector.broadcast %cst_25 : f32 to vector<8x256xf32>
      %530 = arith.maximumf %528, %529 : vector<8x256xf32>
      %531 = vector.broadcast %90 : f32 to vector<8x256xf32>
      %532 = arith.mulf %263, %531 : vector<8x256xf32>
      %533 = vector.broadcast %91 : f32 to vector<8x256xf32>
      %534 = arith.mulf %278, %533 : vector<8x256xf32>
      %535 = arith.addf %532, %534 : vector<8x256xf32>
      %536 = vector.broadcast %92 : f32 to vector<8x256xf32>
      %537 = arith.mulf %293, %536 : vector<8x256xf32>
      %538 = arith.addf %535, %537 : vector<8x256xf32>
      %539 = vector.broadcast %93 : f32 to vector<8x256xf32>
      %540 = arith.mulf %308, %539 : vector<8x256xf32>
      %541 = arith.addf %538, %540 : vector<8x256xf32>
      %542 = vector.broadcast %94 : f32 to vector<8x256xf32>
      %543 = arith.mulf %323, %542 : vector<8x256xf32>
      %544 = arith.addf %541, %543 : vector<8x256xf32>
      %545 = vector.broadcast %95 : f32 to vector<8x256xf32>
      %546 = arith.mulf %338, %545 : vector<8x256xf32>
      %547 = arith.addf %544, %546 : vector<8x256xf32>
      %548 = vector.broadcast %96 : f32 to vector<8x256xf32>
      %549 = arith.mulf %353, %548 : vector<8x256xf32>
      %550 = arith.addf %547, %549 : vector<8x256xf32>
      %551 = vector.broadcast %97 : f32 to vector<8x256xf32>
      %552 = arith.mulf %368, %551 : vector<8x256xf32>
      %553 = arith.addf %550, %552 : vector<8x256xf32>
      %554 = vector.broadcast %98 : f32 to vector<8x256xf32>
      %555 = arith.mulf %383, %554 : vector<8x256xf32>
      %556 = arith.addf %553, %555 : vector<8x256xf32>
      %557 = vector.broadcast %99 : f32 to vector<8x256xf32>
      %558 = arith.mulf %398, %557 : vector<8x256xf32>
      %559 = arith.addf %556, %558 : vector<8x256xf32>
      %560 = vector.broadcast %104 : f32 to vector<8x256xf32>
      %561 = arith.addf %559, %560 : vector<8x256xf32>
      %cst_26 = arith.constant 0.000000e+00 : f32
      %562 = vector.broadcast %cst_26 : f32 to vector<8x256xf32>
      %563 = arith.maximumf %561, %562 : vector<8x256xf32>
      %564 = vector.broadcast %105 : f32 to vector<8x256xf32>
      %565 = arith.mulf %431, %564 : vector<8x256xf32>
      %566 = vector.broadcast %106 : f32 to vector<8x256xf32>
      %567 = arith.mulf %464, %566 : vector<8x256xf32>
      %568 = arith.addf %565, %567 : vector<8x256xf32>
      %569 = vector.broadcast %107 : f32 to vector<8x256xf32>
      %570 = arith.mulf %497, %569 : vector<8x256xf32>
      %571 = arith.addf %568, %570 : vector<8x256xf32>
      %572 = vector.broadcast %108 : f32 to vector<8x256xf32>
      %573 = arith.mulf %530, %572 : vector<8x256xf32>
      %574 = arith.addf %571, %573 : vector<8x256xf32>
      %575 = vector.broadcast %109 : f32 to vector<8x256xf32>
      %576 = arith.mulf %563, %575 : vector<8x256xf32>
      %577 = arith.addf %574, %576 : vector<8x256xf32>
      %578 = vector.broadcast %115 : f32 to vector<8x256xf32>
      %579 = arith.addf %577, %578 : vector<8x256xf32>
      %580 = vector.broadcast %110 : f32 to vector<8x256xf32>
      %581 = arith.mulf %431, %580 : vector<8x256xf32>
      %582 = vector.broadcast %111 : f32 to vector<8x256xf32>
      %583 = arith.mulf %464, %582 : vector<8x256xf32>
      %584 = arith.addf %581, %583 : vector<8x256xf32>
      %585 = vector.broadcast %112 : f32 to vector<8x256xf32>
      %586 = arith.mulf %497, %585 : vector<8x256xf32>
      %587 = arith.addf %584, %586 : vector<8x256xf32>
      %588 = vector.broadcast %113 : f32 to vector<8x256xf32>
      %589 = arith.mulf %530, %588 : vector<8x256xf32>
      %590 = arith.addf %587, %589 : vector<8x256xf32>
      %591 = vector.broadcast %114 : f32 to vector<8x256xf32>
      %592 = arith.mulf %563, %591 : vector<8x256xf32>
      %593 = arith.addf %590, %592 : vector<8x256xf32>
      %594 = vector.broadcast %116 : f32 to vector<8x256xf32>
      %595 = arith.addf %593, %594 : vector<8x256xf32>
      %596 = vector.broadcast %117 : f32 to vector<8x256xf32>
      %597 = arith.mulf %579, %596 : vector<8x256xf32>
      %598 = vector.broadcast %118 : f32 to vector<8x256xf32>
      %599 = arith.mulf %595, %598 : vector<8x256xf32>
      %600 = arith.addf %597, %599 : vector<8x256xf32>
      %601 = vector.broadcast %127 : f32 to vector<8x256xf32>
      %602 = arith.addf %600, %601 : vector<8x256xf32>
      %cst_27 = arith.constant 0.000000e+00 : f32
      %603 = vector.broadcast %cst_27 : f32 to vector<8x256xf32>
      %604 = arith.maximumf %602, %603 : vector<8x256xf32>
      %605 = vector.broadcast %119 : f32 to vector<8x256xf32>
      %606 = arith.mulf %579, %605 : vector<8x256xf32>
      %607 = vector.broadcast %120 : f32 to vector<8x256xf32>
      %608 = arith.mulf %595, %607 : vector<8x256xf32>
      %609 = arith.addf %606, %608 : vector<8x256xf32>
      %610 = vector.broadcast %128 : f32 to vector<8x256xf32>
      %611 = arith.addf %609, %610 : vector<8x256xf32>
      %cst_28 = arith.constant 0.000000e+00 : f32
      %612 = vector.broadcast %cst_28 : f32 to vector<8x256xf32>
      %613 = arith.maximumf %611, %612 : vector<8x256xf32>
      %614 = vector.broadcast %121 : f32 to vector<8x256xf32>
      %615 = arith.mulf %579, %614 : vector<8x256xf32>
      %616 = vector.broadcast %122 : f32 to vector<8x256xf32>
      %617 = arith.mulf %595, %616 : vector<8x256xf32>
      %618 = arith.addf %615, %617 : vector<8x256xf32>
      %619 = vector.broadcast %129 : f32 to vector<8x256xf32>
      %620 = arith.addf %618, %619 : vector<8x256xf32>
      %cst_29 = arith.constant 0.000000e+00 : f32
      %621 = vector.broadcast %cst_29 : f32 to vector<8x256xf32>
      %622 = arith.maximumf %620, %621 : vector<8x256xf32>
      %623 = vector.broadcast %123 : f32 to vector<8x256xf32>
      %624 = arith.mulf %579, %623 : vector<8x256xf32>
      %625 = vector.broadcast %124 : f32 to vector<8x256xf32>
      %626 = arith.mulf %595, %625 : vector<8x256xf32>
      %627 = arith.addf %624, %626 : vector<8x256xf32>
      %628 = vector.broadcast %130 : f32 to vector<8x256xf32>
      %629 = arith.addf %627, %628 : vector<8x256xf32>
      %cst_30 = arith.constant 0.000000e+00 : f32
      %630 = vector.broadcast %cst_30 : f32 to vector<8x256xf32>
      %631 = arith.maximumf %629, %630 : vector<8x256xf32>
      %632 = vector.broadcast %125 : f32 to vector<8x256xf32>
      %633 = arith.mulf %579, %632 : vector<8x256xf32>
      %634 = vector.broadcast %126 : f32 to vector<8x256xf32>
      %635 = arith.mulf %595, %634 : vector<8x256xf32>
      %636 = arith.addf %633, %635 : vector<8x256xf32>
      %637 = vector.broadcast %131 : f32 to vector<8x256xf32>
      %638 = arith.addf %636, %637 : vector<8x256xf32>
      %cst_31 = arith.constant 0.000000e+00 : f32
      %639 = vector.broadcast %cst_31 : f32 to vector<8x256xf32>
      %640 = arith.maximumf %638, %639 : vector<8x256xf32>
      %641 = vector.broadcast %132 : f32 to vector<8x256xf32>
      %642 = arith.mulf %604, %641 : vector<8x256xf32>
      %643 = vector.broadcast %133 : f32 to vector<8x256xf32>
      %644 = arith.mulf %613, %643 : vector<8x256xf32>
      %645 = arith.addf %642, %644 : vector<8x256xf32>
      %646 = vector.broadcast %134 : f32 to vector<8x256xf32>
      %647 = arith.mulf %622, %646 : vector<8x256xf32>
      %648 = arith.addf %645, %647 : vector<8x256xf32>
      %649 = vector.broadcast %135 : f32 to vector<8x256xf32>
      %650 = arith.mulf %631, %649 : vector<8x256xf32>
      %651 = arith.addf %648, %650 : vector<8x256xf32>
      %652 = vector.broadcast %136 : f32 to vector<8x256xf32>
      %653 = arith.mulf %640, %652 : vector<8x256xf32>
      %654 = arith.addf %651, %653 : vector<8x256xf32>
      %655 = vector.broadcast %182 : f32 to vector<8x256xf32>
      %656 = arith.addf %654, %655 : vector<8x256xf32>
      %cst_32 = arith.constant 0.000000e+00 : f32
      %657 = vector.broadcast %cst_32 : f32 to vector<8x256xf32>
      %658 = arith.maximumf %656, %657 : vector<8x256xf32>
      %659 = vector.broadcast %137 : f32 to vector<8x256xf32>
      %660 = arith.mulf %604, %659 : vector<8x256xf32>
      %661 = vector.broadcast %138 : f32 to vector<8x256xf32>
      %662 = arith.mulf %613, %661 : vector<8x256xf32>
      %663 = arith.addf %660, %662 : vector<8x256xf32>
      %664 = vector.broadcast %139 : f32 to vector<8x256xf32>
      %665 = arith.mulf %622, %664 : vector<8x256xf32>
      %666 = arith.addf %663, %665 : vector<8x256xf32>
      %667 = vector.broadcast %140 : f32 to vector<8x256xf32>
      %668 = arith.mulf %631, %667 : vector<8x256xf32>
      %669 = arith.addf %666, %668 : vector<8x256xf32>
      %670 = vector.broadcast %141 : f32 to vector<8x256xf32>
      %671 = arith.mulf %640, %670 : vector<8x256xf32>
      %672 = arith.addf %669, %671 : vector<8x256xf32>
      %673 = vector.broadcast %183 : f32 to vector<8x256xf32>
      %674 = arith.addf %672, %673 : vector<8x256xf32>
      %cst_33 = arith.constant 0.000000e+00 : f32
      %675 = vector.broadcast %cst_33 : f32 to vector<8x256xf32>
      %676 = arith.maximumf %674, %675 : vector<8x256xf32>
      %677 = vector.broadcast %142 : f32 to vector<8x256xf32>
      %678 = arith.mulf %604, %677 : vector<8x256xf32>
      %679 = vector.broadcast %143 : f32 to vector<8x256xf32>
      %680 = arith.mulf %613, %679 : vector<8x256xf32>
      %681 = arith.addf %678, %680 : vector<8x256xf32>
      %682 = vector.broadcast %144 : f32 to vector<8x256xf32>
      %683 = arith.mulf %622, %682 : vector<8x256xf32>
      %684 = arith.addf %681, %683 : vector<8x256xf32>
      %685 = vector.broadcast %145 : f32 to vector<8x256xf32>
      %686 = arith.mulf %631, %685 : vector<8x256xf32>
      %687 = arith.addf %684, %686 : vector<8x256xf32>
      %688 = vector.broadcast %146 : f32 to vector<8x256xf32>
      %689 = arith.mulf %640, %688 : vector<8x256xf32>
      %690 = arith.addf %687, %689 : vector<8x256xf32>
      %691 = vector.broadcast %184 : f32 to vector<8x256xf32>
      %692 = arith.addf %690, %691 : vector<8x256xf32>
      %cst_34 = arith.constant 0.000000e+00 : f32
      %693 = vector.broadcast %cst_34 : f32 to vector<8x256xf32>
      %694 = arith.maximumf %692, %693 : vector<8x256xf32>
      %695 = vector.broadcast %147 : f32 to vector<8x256xf32>
      %696 = arith.mulf %604, %695 : vector<8x256xf32>
      %697 = vector.broadcast %148 : f32 to vector<8x256xf32>
      %698 = arith.mulf %613, %697 : vector<8x256xf32>
      %699 = arith.addf %696, %698 : vector<8x256xf32>
      %700 = vector.broadcast %149 : f32 to vector<8x256xf32>
      %701 = arith.mulf %622, %700 : vector<8x256xf32>
      %702 = arith.addf %699, %701 : vector<8x256xf32>
      %703 = vector.broadcast %150 : f32 to vector<8x256xf32>
      %704 = arith.mulf %631, %703 : vector<8x256xf32>
      %705 = arith.addf %702, %704 : vector<8x256xf32>
      %706 = vector.broadcast %151 : f32 to vector<8x256xf32>
      %707 = arith.mulf %640, %706 : vector<8x256xf32>
      %708 = arith.addf %705, %707 : vector<8x256xf32>
      %709 = vector.broadcast %185 : f32 to vector<8x256xf32>
      %710 = arith.addf %708, %709 : vector<8x256xf32>
      %cst_35 = arith.constant 0.000000e+00 : f32
      %711 = vector.broadcast %cst_35 : f32 to vector<8x256xf32>
      %712 = arith.maximumf %710, %711 : vector<8x256xf32>
      %713 = vector.broadcast %152 : f32 to vector<8x256xf32>
      %714 = arith.mulf %604, %713 : vector<8x256xf32>
      %715 = vector.broadcast %153 : f32 to vector<8x256xf32>
      %716 = arith.mulf %613, %715 : vector<8x256xf32>
      %717 = arith.addf %714, %716 : vector<8x256xf32>
      %718 = vector.broadcast %154 : f32 to vector<8x256xf32>
      %719 = arith.mulf %622, %718 : vector<8x256xf32>
      %720 = arith.addf %717, %719 : vector<8x256xf32>
      %721 = vector.broadcast %155 : f32 to vector<8x256xf32>
      %722 = arith.mulf %631, %721 : vector<8x256xf32>
      %723 = arith.addf %720, %722 : vector<8x256xf32>
      %724 = vector.broadcast %156 : f32 to vector<8x256xf32>
      %725 = arith.mulf %640, %724 : vector<8x256xf32>
      %726 = arith.addf %723, %725 : vector<8x256xf32>
      %727 = vector.broadcast %186 : f32 to vector<8x256xf32>
      %728 = arith.addf %726, %727 : vector<8x256xf32>
      %cst_36 = arith.constant 0.000000e+00 : f32
      %729 = vector.broadcast %cst_36 : f32 to vector<8x256xf32>
      %730 = arith.maximumf %728, %729 : vector<8x256xf32>
      %731 = vector.broadcast %157 : f32 to vector<8x256xf32>
      %732 = arith.mulf %604, %731 : vector<8x256xf32>
      %733 = vector.broadcast %158 : f32 to vector<8x256xf32>
      %734 = arith.mulf %613, %733 : vector<8x256xf32>
      %735 = arith.addf %732, %734 : vector<8x256xf32>
      %736 = vector.broadcast %159 : f32 to vector<8x256xf32>
      %737 = arith.mulf %622, %736 : vector<8x256xf32>
      %738 = arith.addf %735, %737 : vector<8x256xf32>
      %739 = vector.broadcast %160 : f32 to vector<8x256xf32>
      %740 = arith.mulf %631, %739 : vector<8x256xf32>
      %741 = arith.addf %738, %740 : vector<8x256xf32>
      %742 = vector.broadcast %161 : f32 to vector<8x256xf32>
      %743 = arith.mulf %640, %742 : vector<8x256xf32>
      %744 = arith.addf %741, %743 : vector<8x256xf32>
      %745 = vector.broadcast %187 : f32 to vector<8x256xf32>
      %746 = arith.addf %744, %745 : vector<8x256xf32>
      %cst_37 = arith.constant 0.000000e+00 : f32
      %747 = vector.broadcast %cst_37 : f32 to vector<8x256xf32>
      %748 = arith.maximumf %746, %747 : vector<8x256xf32>
      %749 = vector.broadcast %162 : f32 to vector<8x256xf32>
      %750 = arith.mulf %604, %749 : vector<8x256xf32>
      %751 = vector.broadcast %163 : f32 to vector<8x256xf32>
      %752 = arith.mulf %613, %751 : vector<8x256xf32>
      %753 = arith.addf %750, %752 : vector<8x256xf32>
      %754 = vector.broadcast %164 : f32 to vector<8x256xf32>
      %755 = arith.mulf %622, %754 : vector<8x256xf32>
      %756 = arith.addf %753, %755 : vector<8x256xf32>
      %757 = vector.broadcast %165 : f32 to vector<8x256xf32>
      %758 = arith.mulf %631, %757 : vector<8x256xf32>
      %759 = arith.addf %756, %758 : vector<8x256xf32>
      %760 = vector.broadcast %166 : f32 to vector<8x256xf32>
      %761 = arith.mulf %640, %760 : vector<8x256xf32>
      %762 = arith.addf %759, %761 : vector<8x256xf32>
      %763 = vector.broadcast %188 : f32 to vector<8x256xf32>
      %764 = arith.addf %762, %763 : vector<8x256xf32>
      %cst_38 = arith.constant 0.000000e+00 : f32
      %765 = vector.broadcast %cst_38 : f32 to vector<8x256xf32>
      %766 = arith.maximumf %764, %765 : vector<8x256xf32>
      %767 = vector.broadcast %167 : f32 to vector<8x256xf32>
      %768 = arith.mulf %604, %767 : vector<8x256xf32>
      %769 = vector.broadcast %168 : f32 to vector<8x256xf32>
      %770 = arith.mulf %613, %769 : vector<8x256xf32>
      %771 = arith.addf %768, %770 : vector<8x256xf32>
      %772 = vector.broadcast %169 : f32 to vector<8x256xf32>
      %773 = arith.mulf %622, %772 : vector<8x256xf32>
      %774 = arith.addf %771, %773 : vector<8x256xf32>
      %775 = vector.broadcast %170 : f32 to vector<8x256xf32>
      %776 = arith.mulf %631, %775 : vector<8x256xf32>
      %777 = arith.addf %774, %776 : vector<8x256xf32>
      %778 = vector.broadcast %171 : f32 to vector<8x256xf32>
      %779 = arith.mulf %640, %778 : vector<8x256xf32>
      %780 = arith.addf %777, %779 : vector<8x256xf32>
      %781 = vector.broadcast %189 : f32 to vector<8x256xf32>
      %782 = arith.addf %780, %781 : vector<8x256xf32>
      %cst_39 = arith.constant 0.000000e+00 : f32
      %783 = vector.broadcast %cst_39 : f32 to vector<8x256xf32>
      %784 = arith.maximumf %782, %783 : vector<8x256xf32>
      %785 = vector.broadcast %172 : f32 to vector<8x256xf32>
      %786 = arith.mulf %604, %785 : vector<8x256xf32>
      %787 = vector.broadcast %173 : f32 to vector<8x256xf32>
      %788 = arith.mulf %613, %787 : vector<8x256xf32>
      %789 = arith.addf %786, %788 : vector<8x256xf32>
      %790 = vector.broadcast %174 : f32 to vector<8x256xf32>
      %791 = arith.mulf %622, %790 : vector<8x256xf32>
      %792 = arith.addf %789, %791 : vector<8x256xf32>
      %793 = vector.broadcast %175 : f32 to vector<8x256xf32>
      %794 = arith.mulf %631, %793 : vector<8x256xf32>
      %795 = arith.addf %792, %794 : vector<8x256xf32>
      %796 = vector.broadcast %176 : f32 to vector<8x256xf32>
      %797 = arith.mulf %640, %796 : vector<8x256xf32>
      %798 = arith.addf %795, %797 : vector<8x256xf32>
      %799 = vector.broadcast %190 : f32 to vector<8x256xf32>
      %800 = arith.addf %798, %799 : vector<8x256xf32>
      %cst_40 = arith.constant 0.000000e+00 : f32
      %801 = vector.broadcast %cst_40 : f32 to vector<8x256xf32>
      %802 = arith.maximumf %800, %801 : vector<8x256xf32>
      %803 = vector.broadcast %177 : f32 to vector<8x256xf32>
      %804 = arith.mulf %604, %803 : vector<8x256xf32>
      %805 = vector.broadcast %178 : f32 to vector<8x256xf32>
      %806 = arith.mulf %613, %805 : vector<8x256xf32>
      %807 = arith.addf %804, %806 : vector<8x256xf32>
      %808 = vector.broadcast %179 : f32 to vector<8x256xf32>
      %809 = arith.mulf %622, %808 : vector<8x256xf32>
      %810 = arith.addf %807, %809 : vector<8x256xf32>
      %811 = vector.broadcast %180 : f32 to vector<8x256xf32>
      %812 = arith.mulf %631, %811 : vector<8x256xf32>
      %813 = arith.addf %810, %812 : vector<8x256xf32>
      %814 = vector.broadcast %181 : f32 to vector<8x256xf32>
      %815 = arith.mulf %640, %814 : vector<8x256xf32>
      %816 = arith.addf %813, %815 : vector<8x256xf32>
      %817 = vector.broadcast %191 : f32 to vector<8x256xf32>
      %818 = arith.addf %816, %817 : vector<8x256xf32>
      %cst_41 = arith.constant 0.000000e+00 : f32
      %819 = vector.broadcast %cst_41 : f32 to vector<8x256xf32>
      %820 = arith.maximumf %818, %819 : vector<8x256xf32>
      %821 = vector.broadcast %192 : f32 to vector<8x256xf32>
      %822 = arith.mulf %658, %821 : vector<8x256xf32>
      %823 = vector.broadcast %193 : f32 to vector<8x256xf32>
      %824 = arith.mulf %676, %823 : vector<8x256xf32>
      %825 = arith.addf %822, %824 : vector<8x256xf32>
      %826 = vector.broadcast %194 : f32 to vector<8x256xf32>
      %827 = arith.mulf %694, %826 : vector<8x256xf32>
      %828 = arith.addf %825, %827 : vector<8x256xf32>
      %829 = vector.broadcast %195 : f32 to vector<8x256xf32>
      %830 = arith.mulf %712, %829 : vector<8x256xf32>
      %831 = arith.addf %828, %830 : vector<8x256xf32>
      %832 = vector.broadcast %196 : f32 to vector<8x256xf32>
      %833 = arith.mulf %730, %832 : vector<8x256xf32>
      %834 = arith.addf %831, %833 : vector<8x256xf32>
      %835 = vector.broadcast %197 : f32 to vector<8x256xf32>
      %836 = arith.mulf %748, %835 : vector<8x256xf32>
      %837 = arith.addf %834, %836 : vector<8x256xf32>
      %838 = vector.broadcast %198 : f32 to vector<8x256xf32>
      %839 = arith.mulf %766, %838 : vector<8x256xf32>
      %840 = arith.addf %837, %839 : vector<8x256xf32>
      %841 = vector.broadcast %199 : f32 to vector<8x256xf32>
      %842 = arith.mulf %784, %841 : vector<8x256xf32>
      %843 = arith.addf %840, %842 : vector<8x256xf32>
      %844 = vector.broadcast %200 : f32 to vector<8x256xf32>
      %845 = arith.mulf %802, %844 : vector<8x256xf32>
      %846 = arith.addf %843, %845 : vector<8x256xf32>
      %847 = vector.broadcast %201 : f32 to vector<8x256xf32>
      %848 = arith.mulf %820, %847 : vector<8x256xf32>
      %849 = arith.addf %846, %848 : vector<8x256xf32>
      %850 = vector.broadcast %232 : f32 to vector<8x256xf32>
      %851 = arith.addf %849, %850 : vector<8x256xf32>
      %852 = vector.broadcast %202 : f32 to vector<8x256xf32>
      %853 = arith.mulf %658, %852 : vector<8x256xf32>
      %854 = vector.broadcast %203 : f32 to vector<8x256xf32>
      %855 = arith.mulf %676, %854 : vector<8x256xf32>
      %856 = arith.addf %853, %855 : vector<8x256xf32>
      %857 = vector.broadcast %204 : f32 to vector<8x256xf32>
      %858 = arith.mulf %694, %857 : vector<8x256xf32>
      %859 = arith.addf %856, %858 : vector<8x256xf32>
      %860 = vector.broadcast %205 : f32 to vector<8x256xf32>
      %861 = arith.mulf %712, %860 : vector<8x256xf32>
      %862 = arith.addf %859, %861 : vector<8x256xf32>
      %863 = vector.broadcast %206 : f32 to vector<8x256xf32>
      %864 = arith.mulf %730, %863 : vector<8x256xf32>
      %865 = arith.addf %862, %864 : vector<8x256xf32>
      %866 = vector.broadcast %207 : f32 to vector<8x256xf32>
      %867 = arith.mulf %748, %866 : vector<8x256xf32>
      %868 = arith.addf %865, %867 : vector<8x256xf32>
      %869 = vector.broadcast %208 : f32 to vector<8x256xf32>
      %870 = arith.mulf %766, %869 : vector<8x256xf32>
      %871 = arith.addf %868, %870 : vector<8x256xf32>
      %872 = vector.broadcast %209 : f32 to vector<8x256xf32>
      %873 = arith.mulf %784, %872 : vector<8x256xf32>
      %874 = arith.addf %871, %873 : vector<8x256xf32>
      %875 = vector.broadcast %210 : f32 to vector<8x256xf32>
      %876 = arith.mulf %802, %875 : vector<8x256xf32>
      %877 = arith.addf %874, %876 : vector<8x256xf32>
      %878 = vector.broadcast %211 : f32 to vector<8x256xf32>
      %879 = arith.mulf %820, %878 : vector<8x256xf32>
      %880 = arith.addf %877, %879 : vector<8x256xf32>
      %881 = vector.broadcast %233 : f32 to vector<8x256xf32>
      %882 = arith.addf %880, %881 : vector<8x256xf32>
      %883 = vector.broadcast %212 : f32 to vector<8x256xf32>
      %884 = arith.mulf %658, %883 : vector<8x256xf32>
      %885 = vector.broadcast %213 : f32 to vector<8x256xf32>
      %886 = arith.mulf %676, %885 : vector<8x256xf32>
      %887 = arith.addf %884, %886 : vector<8x256xf32>
      %888 = vector.broadcast %214 : f32 to vector<8x256xf32>
      %889 = arith.mulf %694, %888 : vector<8x256xf32>
      %890 = arith.addf %887, %889 : vector<8x256xf32>
      %891 = vector.broadcast %215 : f32 to vector<8x256xf32>
      %892 = arith.mulf %712, %891 : vector<8x256xf32>
      %893 = arith.addf %890, %892 : vector<8x256xf32>
      %894 = vector.broadcast %216 : f32 to vector<8x256xf32>
      %895 = arith.mulf %730, %894 : vector<8x256xf32>
      %896 = arith.addf %893, %895 : vector<8x256xf32>
      %897 = vector.broadcast %217 : f32 to vector<8x256xf32>
      %898 = arith.mulf %748, %897 : vector<8x256xf32>
      %899 = arith.addf %896, %898 : vector<8x256xf32>
      %900 = vector.broadcast %218 : f32 to vector<8x256xf32>
      %901 = arith.mulf %766, %900 : vector<8x256xf32>
      %902 = arith.addf %899, %901 : vector<8x256xf32>
      %903 = vector.broadcast %219 : f32 to vector<8x256xf32>
      %904 = arith.mulf %784, %903 : vector<8x256xf32>
      %905 = arith.addf %902, %904 : vector<8x256xf32>
      %906 = vector.broadcast %220 : f32 to vector<8x256xf32>
      %907 = arith.mulf %802, %906 : vector<8x256xf32>
      %908 = arith.addf %905, %907 : vector<8x256xf32>
      %909 = vector.broadcast %221 : f32 to vector<8x256xf32>
      %910 = arith.mulf %820, %909 : vector<8x256xf32>
      %911 = arith.addf %908, %910 : vector<8x256xf32>
      %912 = vector.broadcast %234 : f32 to vector<8x256xf32>
      %913 = arith.addf %911, %912 : vector<8x256xf32>
      %914 = vector.broadcast %222 : f32 to vector<8x256xf32>
      %915 = arith.mulf %658, %914 : vector<8x256xf32>
      %916 = vector.broadcast %223 : f32 to vector<8x256xf32>
      %917 = arith.mulf %676, %916 : vector<8x256xf32>
      %918 = arith.addf %915, %917 : vector<8x256xf32>
      %919 = vector.broadcast %224 : f32 to vector<8x256xf32>
      %920 = arith.mulf %694, %919 : vector<8x256xf32>
      %921 = arith.addf %918, %920 : vector<8x256xf32>
      %922 = vector.broadcast %225 : f32 to vector<8x256xf32>
      %923 = arith.mulf %712, %922 : vector<8x256xf32>
      %924 = arith.addf %921, %923 : vector<8x256xf32>
      %925 = vector.broadcast %226 : f32 to vector<8x256xf32>
      %926 = arith.mulf %730, %925 : vector<8x256xf32>
      %927 = arith.addf %924, %926 : vector<8x256xf32>
      %928 = vector.broadcast %227 : f32 to vector<8x256xf32>
      %929 = arith.mulf %748, %928 : vector<8x256xf32>
      %930 = arith.addf %927, %929 : vector<8x256xf32>
      %931 = vector.broadcast %228 : f32 to vector<8x256xf32>
      %932 = arith.mulf %766, %931 : vector<8x256xf32>
      %933 = arith.addf %930, %932 : vector<8x256xf32>
      %934 = vector.broadcast %229 : f32 to vector<8x256xf32>
      %935 = arith.mulf %784, %934 : vector<8x256xf32>
      %936 = arith.addf %933, %935 : vector<8x256xf32>
      %937 = vector.broadcast %230 : f32 to vector<8x256xf32>
      %938 = arith.mulf %802, %937 : vector<8x256xf32>
      %939 = arith.addf %936, %938 : vector<8x256xf32>
      %940 = vector.broadcast %231 : f32 to vector<8x256xf32>
      %941 = arith.mulf %820, %940 : vector<8x256xf32>
      %942 = arith.addf %939, %941 : vector<8x256xf32>
      %943 = vector.broadcast %235 : f32 to vector<8x256xf32>
      %944 = arith.addf %942, %943 : vector<8x256xf32>
      %c0_42 = arith.constant 0 : index
      %945 = arith.index_cast %arg4 : i32 to index
      %c0_43 = arith.constant 0 : index
      %c0_44 = arith.constant 0 : index
      %946 = vector.load %arg3[%c0_42, %945, %c0_43, %c0_44] : memref<4x2x8x256xf32, #tpu.memory_space<vmem>>, vector<1x1x8x256xf32>
      %947 = vector.shape_cast %946 : vector<1x1x8x256xf32> to vector<8x256xf32>
      %948 = vector.shape_cast %851 : vector<8x256xf32> to vector<1x1x8x256xf32>
      tpu.vector_store %arg3[%c0_42, %945, %c0_43, %c0_44], %948 {strides = array<i32>} : memref<4x2x8x256xf32, #tpu.memory_space<vmem>>, vector<1x1x8x256xf32>,
      %c1_45 = arith.constant 1 : index
      %949 = arith.index_cast %arg4 : i32 to index
      %c0_46 = arith.constant 0 : index
      %c0_47 = arith.constant 0 : index
      %950 = vector.load %arg3[%c1_45, %949, %c0_46, %c0_47] : memref<4x2x8x256xf32, #tpu.memory_space<vmem>>, vector<1x1x8x256xf32>
      %951 = vector.shape_cast %950 : vector<1x1x8x256xf32> to vector<8x256xf32>
      %952 = vector.shape_cast %882 : vector<8x256xf32> to vector<1x1x8x256xf32>
      tpu.vector_store %arg3[%c1_45, %949, %c0_46, %c0_47], %952 {strides = array<i32>} : memref<4x2x8x256xf32, #tpu.memory_space<vmem>>, vector<1x1x8x256xf32>,
      %c2_48 = arith.constant 2 : index
      %953 = arith.index_cast %arg4 : i32 to index
      %c0_49 = arith.constant 0 : index
      %c0_50 = arith.constant 0 : index
      %954 = vector.load %arg3[%c2_48, %953, %c0_49, %c0_50] : memref<4x2x8x256xf32, #tpu.memory_space<vmem>>, vector<1x1x8x256xf32>
      %955 = vector.shape_cast %954 : vector<1x1x8x256xf32> to vector<8x256xf32>
      %956 = vector.shape_cast %913 : vector<8x256xf32> to vector<1x1x8x256xf32>
      tpu.vector_store %arg3[%c2_48, %953, %c0_49, %c0_50], %956 {strides = array<i32>} : memref<4x2x8x256xf32, #tpu.memory_space<vmem>>, vector<1x1x8x256xf32>,
      %c3_51 = arith.constant 3 : index
      %957 = arith.index_cast %arg4 : i32 to index
      %c0_52 = arith.constant 0 : index
      %c0_53 = arith.constant 0 : index
      %958 = vector.load %arg3[%c3_51, %957, %c0_52, %c0_53] : memref<4x2x8x256xf32, #tpu.memory_space<vmem>>, vector<1x1x8x256xf32>
      %959 = vector.shape_cast %958 : vector<1x1x8x256xf32> to vector<8x256xf32>
      %960 = vector.shape_cast %944 : vector<8x256xf32> to vector<1x1x8x256xf32>
      tpu.vector_store %arg3[%c3_51, %957, %c0_52, %c0_53], %960 {strides = array<i32>} : memref<4x2x8x256xf32, #tpu.memory_space<vmem>>, vector<1x1x8x256xf32>,
    }
    %c2_i32_0 = arith.constant 2 : i32
    return
  }
  func.func @transform_0(%arg0: i32) -> i32 {
    %c0_i32 = arith.constant 0 : i32
    %c0_i32_0 = arith.constant 0 : i32
    return %c0_i32 : i32
  }
  func.func @transform_1(%arg0: i32) -> (i32, i32, i32, i32) {
    %c0_i32 = arith.constant 0 : i32
    %c0_i32_0 = arith.constant 0 : i32
    %c0_i32_1 = arith.constant 0 : i32
    %c0_i32_2 = arith.constant 0 : i32
    return %c0_i32, %arg0, %c0_i32_0, %c0_i32_1 : i32, i32, i32, i32
  }
  func.func @transform_2(%arg0: i32) -> (i32, i32, i32, i32) {
    %c0_i32 = arith.constant 0 : i32
    %c0_i32_0 = arith.constant 0 : i32
    %c0_i32_1 = arith.constant 0 : i32
    %c0_i32_2 = arith.constant 0 : i32
    return %c0_i32, %arg0, %c0_i32_0, %c0_i32_1 : i32, i32, i32, i32
  }
}

</mosaic_0001>

<llo_original>
// kernel: tpu_custom_call.1
$region0: #{tpu_custom_call.1}
  #allocation0 [shape = 'u32[]', space=smem, size = 0x4, offset = 0x4, fixed_abs, tag = 'smem constant byte address 0x4 - core index']
  #allocation1 [shape = 'u32[144,128]{1,0:T(1,128)}', space=vmem, size = 0x12000, scoped, tag = 'internal scratch']
  #allocation8 [shape = 's32[]', space=sflag, size = 0x4, offset = 0, fixed_abs, tag = 'sflag constant byte address 0x0 - dummy sync flag']
  #allocation10 [shape = 's32[]', space=sflag, size = 0x4, offset = 0, fixed_abs, tag = 'sflag constant byte address 0x0 - dummy sync flag']
  %s0 = inlined_call_operand.hbm [shape: f32[236], index: 0, kind: input, shape index: {}]
  %s1 = inlined_call_operand.hbm [shape: f32[4,4,8,256], index: 1, kind: input, shape index: {}]
  %s2 = inlined_call_operand.hbm [shape: f32[4,4,8,256], index: 2, kind: output, shape index: {}]
  %s3 = sld [smem:[#allocation0]]
  $region56: #{tpu_custom_call.1} parent=0
    _
  %s5 = ssub.s32 1, %s3
  %s6 = scalar_select 0, %s5, %s3
  $region1: #{tpu_custom_call.1} parent=0
    #allocation2 [shape = 'u8[1024]{0}', space=smem, size = 0x400, scoped, tag = 'input window, operand 0, single buffered']
    #allocation3 [shape = 's32[2]{0}', space=sflag, size = 0x8, scoped, tag = 'scoped memory for tpu_custom_call.1']
    #allocation4 [shape = 's32[2]{0}', space=sflag, size = 0x8, scoped, tag = 'scoped memory for tpu_custom_call.1']
    #allocation5 [shape = 's32[2]{0}', space=sflag, size = 0x8, scoped, tag = 'scoped memory for tpu_custom_call.1']
    #allocation6 [shape = 'u8[131072]{0}', space=vmem, size = 0x20000, scoped, tag = 'input window, operand 1']
    #allocation7 [shape = 'u8[131072]{0}', space=vmem, size = 0x20000, scoped, tag = 'output window, operand 0']
    %7 = vsyncpa [#allocation5], 0
    %8 = vsyncpa [#allocation3], 0
    %s9 = scalar_lea.sflag [#allocation3], 1
    %10 = vsyncpa %s9, 0
    %11 = vsyncpa [#allocation4], 0
    %s12 = scalar_lea.sflag [#allocation4], 1
    %13 = vsyncpa %s12, 0
    loop: start=0, step=1, limit=4
    $region2: #{tpu_custom_call.1} parent=1 // loop_pre_header
      _
    $region3: #{tpu_custom_call.1} parent=1 // loop_header
      %s15 = sphi 0, %s19
      %p16 = scmp.ge.s32.totalorder %s15, 4
      %s23 = sphi 0, %s23
      %s25 = sphi 0, %s23
      %s26 = sphi 0, %s25
      %s40 = sphi 0, %s26
      %s46 = sphi 0, %s48
      %s49 = sphi 0, %s46
      %s50 = sphi 0, %s49
      %s66 = sphi 0, %s50
      %s72 = sphi 0, %s74
      %s75 = sphi 0, %s72
      %s76 = sphi 0, %s75
      %s92 = sphi 0, %s76
    $region4: #{tpu_custom_call.1} parent=1 // loop_header_branch
      %18 = sbr.rel (%p16) target = $region8
    $region5: #{tpu_custom_call.1} parent=1 // loop_body
      %s20 = ssub.s32 %s15, 1
      %s21 = ssub.s32 %s15, 2
      %s22 = sadd.s32 %s15, 1
      %s24 = sadd.s32 %s23, 1
      %p27 = scmp.eq.s32.totalorder %s15, 1
      %p28 = scmp.ne.s32.totalorder %s23, %s25
      %p29 = scmp.eq.s32.totalorder %s15, 0
      %p30 = por %p28, %p29
      %p31 = scmp.ne.s32.totalorder %s23, %s25
      %p32 = scmp.eq.s32.totalorder %s20, 1
      %p33 = por %p31, %p32
      %p34 = scmp.ne.s32.totalorder %s25, %s26
      %p35 = scmp.eq.s32.totalorder %s20, 0
      %p36 = por %p34, %p35
      %p37 = scmp.ne.s32.totalorder %s25, %s26
      %p38 = scmp.eq.s32.totalorder %s21, 1
      %p39 = por %p37, %p38
      %p41 = scmp.ne.s32.totalorder %s26, %s40
      %p42 = scmp.eq.s32.totalorder %s21, 0
      %p43 = por %p41, %p42
      %s44 = ssub.s32 %s15, %s22
      %p45 = scmp.eq.s32.totalorder %s44, 0
      %s47 = sadd.s32 %s46, 1
      %s48 = scalar_select %p45, %s46, %s47
      %p51 = pneg %p45
      %p52 = scmp.eq.s32.totalorder %s15, 1
      %p53 = por %p51, %p52
      %p54 = scmp.ne.s32.totalorder %s46, %s49
      %p55 = scmp.eq.s32.totalorder %s15, 0
      %p56 = por %p54, %p55
      %p57 = scmp.ne.s32.totalorder %s46, %s49
      %p58 = scmp.eq.s32.totalorder %s20, 1
      %p59 = por %p57, %p58
      %p60 = scmp.ne.s32.totalorder %s49, %s50
      %p61 = scmp.eq.s32.totalorder %s20, 0
      %p62 = por %p60, %p61
      %p63 = scmp.ne.s32.totalorder %s49, %s50
      %p64 = scmp.eq.s32.totalorder %s21, 1
      %p65 = por %p63, %p64
      %p67 = scmp.ne.s32.totalorder %s50, %s66
      %p68 = scmp.eq.s32.totalorder %s21, 0
      %p69 = por %p67, %p68
      %s70 = ssub.s32 %s15, %s22
      %p71 = scmp.eq.s32.totalorder %s70, 0
      %s73 = sadd.s32 %s72, 1
      %s74 = scalar_select %p71, %s72, %s73
      %p77 = pneg %p71
      %p78 = scmp.eq.s32.totalorder %s15, 1
      %p79 = por %p77, %p78
      %p80 = scmp.ne.s32.totalorder %s72, %s75
      %p81 = scmp.eq.s32.totalorder %s15, 0
      %p82 = por %p80, %p81
      %p83 = scmp.ne.s32.totalorder %s72, %s75
      %p84 = scmp.eq.s32.totalorder %s20, 1
      %p85 = por %p83, %p84
      %p86 = scmp.ne.s32.totalorder %s75, %s76
      %p87 = scmp.eq.s32.totalorder %s20, 0
      %p88 = por %p86, %p87
      %p89 = scmp.ne.s32.totalorder %s75, %s76
      %p90 = scmp.eq.s32.totalorder %s21, 1
      %p91 = por %p89, %p90
      %p93 = scmp.ne.s32.totalorder %s76, %s92
      %p94 = scmp.eq.s32.totalorder %s21, 0
      %p95 = por %p93, %p94
      %p96 = scmp.le.s32.totalorder 1, %s15
      %p97 = scmp.lt.s32.totalorder %s15, 3
      %p98 = pnand %p96, %p97
      %p99 = pneg %p98
      // Predicated region
      $region9: #{tpu_custom_call.1} parent=5 // pred_check
        _
      $region10: #{tpu_custom_call.1} parent=5 // pred_check_branch
        %101 = sbr.rel (%p98) target = $region12
      $region11: #{tpu_custom_call.1} parent=5 // pred_region
        %s102 = ssub.s32 %s15, 1
        // Predicated region
        $region13: #{tpu_custom_call.1} parent=11 // pred_check
          %p103 = pneg %p36
        $region14: #{tpu_custom_call.1} parent=11 // pred_check_branch
          %105 = sbr.rel (%p103) target = $region16
        $region15: #{tpu_custom_call.1} parent=11 // pred_region
          %s107 = ssub.s32 32, 32
          %108 = vsyncadd [#allocation5], %s107
          %111 = dma.hbm_to_smem %s0, 32, [#allocation2], [#allocation5]
        $region16: #{tpu_custom_call.1} parent=11 // pred_fallthru
          _
      $region12: #{tpu_custom_call.1} parent=5 // pred_fallthru
        _
      %p112 = scmp.lt.s32.totalorder %s15, 2
      // Predicated region
      $region17: #{tpu_custom_call.1} parent=5 // pred_check
        %p113 = pneg %p112
      $region18: #{tpu_custom_call.1} parent=5 // pred_check_branch
        %115 = sbr.rel (%p113) target = $region20
      $region19: #{tpu_custom_call.1} parent=5 // pred_region
        // Predicated region
        $region21: #{tpu_custom_call.1} parent=19 // pred_check
          %p116 = pneg %p56
        $region22: #{tpu_custom_call.1} parent=19 // pred_check_branch
          %118 = sbr.rel (%p116) target = $region24
        $region23: #{tpu_custom_call.1} parent=19 // pred_region
          #allocation9 [shape = 'u32[6]{0}', space=smem, size = 0x18, scoped, tag = 'DMA stride descriptor']
          %s119 = sand.u32 %s46, 1
          %s120 = scalar_lea.sflag [#allocation3], %s119
          %s121 = sand.u32 %s46, 1
          %s122 = smul.addr %s121, 128
          %s123 = scalar_lea.vmem [#allocation6], %s122
          %s124 = smul.u32 2, %s15
          %s126 = ssub.s32 2048, 2048
          %127 = vsyncadd %s120, %s126
          %s128 = smul.addr %s124, 2
          %s129 = smul.addr %s128, 128
          %s130 = scalar_lea.hbm %s1, %s129
          %s132 = sshll.u32 1, 14
          %s133 = sxor.u32 4294967295, %s132
          %s135 = sld [smem:[#allocation0]]
          %s136 = sadd.s32 2, %s135
          %s138 = sshll.u32 7, 26
          %s139 = sxor.u32 4294967295, %s138
          %s140 = sand.u32 0, %s139
          %s141 = sshll.u32 %s136, 26
          %s142 = sor.u32 %s140, %s141
          %s143 = sshll.u32 %s123, 4
          %s144 = int_to_ptr.vmem [resolvable:$true] %s143
          %150 = sst [smem:[#allocation9]] 1024
          %s151 = scalar_lea.smem [#allocation9], 1
          %152 = sst [smem:[%s151]] 512
          %s153 = scalar_lea.smem [#allocation9], 2
          %154 = sst [smem:[%s153]] 2
          %s155 = scalar_lea.smem [#allocation9], 3
          %156 = sst [smem:[%s155]] 256
          %s157 = scalar_lea.smem [#allocation9], 4
          %158 = sst [smem:[%s157]] 256
          %s159 = scalar_lea.smem [#allocation9], 5
          %160 = sst [smem:[%s159]] 16
          %162 = dma.general %s130, 2048, %s144, %s120, [#allocation8], [#allocation9], %s142, 0
        $region24: #{tpu_custom_call.1} parent=19 // pred_fallthru
          _
      $region20: #{tpu_custom_call.1} parent=5 // pred_fallthru
        _
      %p163 = scmp.le.s32.totalorder 1, %s15
      %p164 = scmp.lt.s32.totalorder %s15, 3
      %p165 = pnand %p163, %p164
      %p166 = pneg %p165
      // Predicated region
      $region25: #{tpu_custom_call.1} parent=5 // pred_check
        _
      $region26: #{tpu_custom_call.1} parent=5 // pred_check_branch
        %168 = sbr.rel (%p165) target = $region28
      $region27: #{tpu_custom_call.1} parent=5 // pred_region
        %s169 = ssub.s32 %s15, 1
        // Predicated region
        $region29: #{tpu_custom_call.1} parent=27 // pred_check
          %p170 = pneg %p36
        $region30: #{tpu_custom_call.1} parent=27 // pred_check_branch
          %172 = sbr.rel (%p170) target = $region32
        $region31: #{tpu_custom_call.1} parent=27 // pred_region
          %173 = dma.done [#allocation5], 32
        $region32: #{tpu_custom_call.1} parent=27 // pred_fallthru
          _
        %s174 = sand.u32 %s49, 1
        %s175 = scalar_lea.sflag [#allocation3], %s174
        %s176 = sand.u32 %s49, 1
        %s177 = smul.addr %s176, 128
        %s178 = scalar_lea.vmem [#allocation6], %s177
        // Predicated region
        $region33: #{tpu_custom_call.1} parent=27 // pred_check
          %p179 = pneg %p62
        $region34: #{tpu_custom_call.1} parent=27 // pred_check_branch
          %181 = sbr.rel (%p179) target = $region36
        $region35: #{tpu_custom_call.1} parent=27 // pred_region
          %182 = dma.done %s175, 2048
        $region36: #{tpu_custom_call.1} parent=27 // pred_fallthru
          _
        %183 = sfence
        %p184 = pneg %p36
        %p185 = pneg %p33
        %s186 = sand.u32 %s49, 1
        %s187 = scalar_lea.sflag [#allocation3], %s186
        %s188 = sand.u32 %s49, 1
        %s189 = smul.addr %s188, 128
        %s190 = scalar_lea.vmem [#allocation6], %s189
        %p191 = pneg %p62
        %p192 = pneg %p59
        %p193 = pneg %p88
        %p194 = pneg %p85
        %s195 = sand.u32 %s75, 1
        %s196 = scalar_lea.sflag [#allocation4], %s195
        %s197 = sand.u32 %s75, 1
        %s198 = smul.addr %s197, 128
        %s199 = scalar_lea.vmem [#allocation7], %s198
        %s200 = smul.u32 2, %s20
        %s201 = smul.u32 2, %s20
        %s202 = sld [smem:[#allocation2]]
        %s203 = sld [smem:[#allocation2 + $0x1]]
        %s204 = sld [smem:[#allocation2 + $0x2]]
        %s205 = sld [smem:[#allocation2 + $0x3]]
        %s206 = sld [smem:[#allocation2 + $0x4]]
        %s207 = sld [smem:[#allocation2 + $0x5]]
        %s208 = sld [smem:[#allocation2 + $0x6]]
        %s209 = sld [smem:[#allocation2 + $0x7]]
        %s210 = sld [smem:[#allocation2 + $0x8]]
        %s211 = sld [smem:[#allocation2 + $0x9]]
        %s212 = sld [smem:[#allocation2 + $0xa]]
        %s213 = sld [smem:[#allocation2 + $0xb]]
        %s214 = sld [smem:[#allocation2 + $0xc]]
        %s215 = sld [smem:[#allocation2 + $0xd]]
        %s216 = sld [smem:[#allocation2 + $0xe]]
        %s217 = sld [smem:[#allocation2 + $0xf]]
        %s218 = sld [smem:[#allocation2 + $0x10]]
        %s219 = sld [smem:[#allocation2 + $0x11]]
        %s220 = sld [smem:[#allocation2 + $0x12]]
        %s221 = sld [smem:[#allocation2 + $0x13]]
        %s222 = sld [smem:[#allocation2 + $0x14]]
        %s223 = sld [smem:[#allocation2 + $0x15]]
        %s224 = sld [smem:[#allocation2 + $0x16]]
        %s225 = sld [smem:[#allocation2 + $0x17]]
        %s226 = sld [smem:[#allocation2 + $0x18]]
        %s227 = sld [smem:[#allocation2 + $0x19]]
        %s228 = sld [smem:[#allocation2 + $0x1a]]
        %s229 = sld [smem:[#allocation2 + $0x1b]]
        %s230 = sld [smem:[#allocation2 + $0x1c]]
        %s231 = sld [smem:[#allocation2 + $0x1d]]
        %s232 = sld [smem:[#allocation2 + $0x1e]]
        %s233 = sld [smem:[#allocation2 + $0x1f]]
        %s234 = sld [smem:[#allocation2 + $0x20]]
        %s235 = sld [smem:[#allocation2 + $0x21]]
        %s236 = sld [smem:[#allocation2 + $0x22]]
        %s237 = sld [smem:[#allocation2 + $0x23]]
        %s238 = sld [smem:[#allocation2 + $0x24]]
        %s239 = sld [smem:[#allocation2 + $0x25]]
        %s240 = sld [smem:[#allocation2 + $0x26]]
        %s241 = sld [smem:[#allocation2 + $0x27]]
        %s242 = sld [smem:[#allocation2 + $0x28]]
        %s243 = sld [smem:[#allocation2 + $0x29]]
        %s244 = sld [smem:[#allocation2 + $0x2a]]
        %s245 = sld [smem:[#allocation2 + $0x2b]]
        %s246 = sld [smem:[#allocation2 + $0x2c]]
        %s247 = sld [smem:[#allocation2 + $0x2d]]
        %s248 = sld [smem:[#allocation2 + $0x2e]]
        %s249 = sld [smem:[#allocation2 + $0x2f]]
        %s250 = sld [smem:[#allocation2 + $0x30]]
        %s251 = sld [smem:[#allocation2 + $0x31]]
        %s252 = sld [smem:[#allocation2 + $0x32]]
        %s253 = sld [smem:[#allocation2 + $0x33]]
        %s254 = sld [smem:[#allocation2 + $0x34]]
        %s255 = sld [smem:[#allocation2 + $0x35]]
        %s256 = sld [smem:[#allocation2 + $0x36]]
        %s257 = sld [smem:[#allocation2 + $0x37]]
        %s258 = sld [smem:[#allocation2 + $0x38]]
        %s259 = sld [smem:[#allocation2 + $0x39]]
        %s260 = sld [smem:[#allocation2 + $0x3a]]
        %s261 = sld [smem:[#allocation2 + $0x3b]]
        %s262 = sld [smem:[#allocation2 + $0x3c]]
        %s263 = sld [smem:[#allocation2 + $0x3d]]
        %s264 = sld [smem:[#allocation2 + $0x3e]]
        %s265 = sld [smem:[#allocation2 + $0x3f]]
        %s266 = sld [smem:[#allocation2 + $0x40]]
        %s267 = sld [smem:[#allocation2 + $0x41]]
        %s268 = sld [smem:[#allocation2 + $0x42]]
        %s269 = sld [smem:[#allocation2 + $0x43]]
        %s270 = sld [smem:[#allocation2 + $0x44]]
        %s271 = sld [smem:[#allocation2 + $0x45]]
        %s272 = sld [smem:[#allocation2 + $0x46]]
        %s273 = sld [smem:[#allocation2 + $0x47]]
        %s274 = sld [smem:[#allocation2 + $0x48]]
        %s275 = sld [smem:[#allocation2 + $0x49]]
        %s276 = sld [smem:[#allocation2 + $0x4a]]
        %s277 = sld [smem:[#allocation2 + $0x4b]]
        %s278 = sld [smem:[#allocation2 + $0x4c]]
        %s279 = sld [smem:[#allocation2 + $0x4d]]
        %s280 = sld [smem:[#allocation2 + $0x4e]]
        %s281 = sld [smem:[#allocation2 + $0x4f]]
        %s282 = sld [smem:[#allocation2 + $0x50]]
        %s283 = sld [smem:[#allocation2 + $0x51]]
        %s284 = sld [smem:[#allocation2 + $0x52]]
        %s285 = sld [smem:[#allocation2 + $0x53]]
        %s286 = sld [smem:[#allocation2 + $0x54]]
        %s287 = sld [smem:[#allocation2 + $0x55]]
        %s288 = sld [smem:[#allocation2 + $0x56]]
        %s289 = sld [smem:[#allocation2 + $0x57]]
        %s290 = sld [smem:[#allocation2 + $0x58]]
        %s291 = sld [smem:[#allocation2 + $0x59]]
        %s292 = sld [smem:[#allocation2 + $0x5a]]
        %s293 = sld [smem:[#allocation2 + $0x5b]]
        %s294 = sld [smem:[#allocation2 + $0x5c]]
        %s295 = sld [smem:[#allocation2 + $0x5d]]
        %s296 = sld [smem:[#allocation2 + $0x5e]]
        %s297 = sld [smem:[#allocation2 + $0x5f]]
        %s298 = sld [smem:[#allocation2 + $0x60]]
        %s299 = sld [smem:[#allocation2 + $0x61]]
        %s300 = sld [smem:[#allocation2 + $0x62]]
        %s301 = sld [smem:[#allocation2 + $0x63]]
        %s302 = sld [smem:[#allocation2 + $0x64]]
        %s303 = sld [smem:[#allocation2 + $0x65]]
        %s304 = sld [smem:[#allocation2 + $0x66]]
        %s305 = sld [smem:[#allocation2 + $0x67]]
        %s306 = sld [smem:[#allocation2 + $0x68]]
        %s307 = sld [smem:[#allocation2 + $0x69]]
        %s308 = sld [smem:[#allocation2 + $0x6a]]
        %s309 = sld [smem:[#allocation2 + $0x6b]]
        %s310 = sld [smem:[#allocation2 + $0x6c]]
        %s311 = sld [smem:[#allocation2 + $0x6d]]
        %s312 = sld [smem:[#allocation2 + $0x6e]]
        %s313 = sld [smem:[#allocation2 + $0x6f]]
        %s314 = sld [smem:[#allocation2 + $0x70]]
        %s315 = sld [smem:[#allocation2 + $0x71]]
        %s316 = sld [smem:[#allocation2 + $0x72]]
        %s317 = sld [smem:[#allocation2 + $0x73]]
        %s318 = sld [smem:[#allocation2 + $0x74]]
        %s319 = sld [smem:[#allocation2 + $0x75]]
        %s320 = sld [smem:[#allocation2 + $0x76]]
        %s321 = sld [smem:[#allocation2 + $0x77]]
        %s322 = sld [smem:[#allocation2 + $0x78]]
        %s323 = sld [smem:[#allocation2 + $0x79]]
        %s324 = sld [smem:[#allocation2 + $0x7a]]
        %s325 = sld [smem:[#allocation2 + $0x7b]]
        %s326 = sld [smem:[#allocation2 + $0x7c]]
        %s327 = sld [smem:[#allocation2 + $0x7d]]
        %s328 = sld [smem:[#allocation2 + $0x7e]]
        %s329 = sld [smem:[#allocation2 + $0x7f]]
        %s330 = sld [smem:[#allocation2 + $0x80]]
        %s331 = sld [smem:[#allocation2 + $0x81]]
        %s332 = sld [smem:[#allocation2 + $0x82]]
        %s333 = sld [smem:[#allocation2 + $0x83]]
        %s334 = sld [smem:[#allocation2 + $0x84]]
        %s335 = sld [smem:[#allocation2 + $0x85]]
        %s336 = sld [smem:[#allocation2 + $0x86]]
        %s337 = sld [smem:[#allocation2 + $0x87]]
        %s338 = sld [smem:[#allocation2 + $0x88]]
        %s339 = sld [smem:[#allocation2 + $0x89]]
        %s340 = sld [smem:[#allocation2 + $0x8a]]
        %s341 = sld [smem:[#allocation2 + $0x8b]]
        %s342 = sld [smem:[#allocation2 + $0x8c]]
        %s343 = sld [smem:[#allocation2 + $0x8d]]
        %s344 = sld [smem:[#allocation2 + $0x8e]]
        %s345 = sld [smem:[#allocation2 + $0x8f]]
        %s346 = sld [smem:[#allocation2 + $0x90]]
        %s347 = sld [smem:[#allocation2 + $0x91]]
        %s348 = sld [smem:[#allocation2 + $0x92]]
        %s349 = sld [smem:[#allocation2 + $0x93]]
        %s350 = sld [smem:[#allocation2 + $0x94]]
        %s351 = sld [smem:[#allocation2 + $0x95]]
        %s352 = sld [smem:[#allocation2 + $0x96]]
        %s353 = sld [smem:[#allocation2 + $0x97]]
        %s354 = sld [smem:[#allocation2 + $0x98]]
        %s355 = sld [smem:[#allocation2 + $0x99]]
        %s356 = sld [smem:[#allocation2 + $0x9a]]
        %s357 = sld [smem:[#allocation2 + $0x9b]]
        %s358 = sld [smem:[#allocation2 + $0x9c]]
        %s359 = sld [smem:[#allocation2 + $0x9d]]
        %s360 = sld [smem:[#allocation2 + $0x9e]]
        %s361 = sld [smem:[#allocation2 + $0x9f]]
        %s362 = sld [smem:[#allocation2 + $0xa0]]
        %s363 = sld [smem:[#allocation2 + $0xa1]]
        %s364 = sld [smem:[#allocation2 + $0xa2]]
        %s365 = sld [smem:[#allocation2 + $0xa3]]
        %s366 = sld [smem:[#allocation2 + $0xa4]]
        %s367 = sld [smem:[#allocation2 + $0xa5]]
        %s368 = sld [smem:[#allocation2 + $0xa6]]
        %s369 = sld [smem:[#allocation2 + $0xa7]]
        %s370 = sld [smem:[#allocation2 + $0xa8]]
        %s371 = sld [smem:[#allocation2 + $0xa9]]
        %s372 = sld [smem:[#allocation2 + $0xaa]]
        %s373 = sld [smem:[#allocation2 + $0xab]]
        %s374 = sld [smem:[#allocation2 + $0xac]]
        %s375 = sld [smem:[#allocation2 + $0xad]]
        %s376 = sld [smem:[#allocation2 + $0xae]]
        %s377 = sld [smem:[#allocation2 + $0xaf]]
        %s378 = sld [smem:[#allocation2 + $0xb0]]
        %s379 = sld [smem:[#allocation2 + $0xb1]]
        %s380 = sld [smem:[#allocation2 + $0xb2]]
        %s381 = sld [smem:[#allocation2 + $0xb3]]
        %s382 = sld [smem:[#allocation2 + $0xb4]]
        %s383 = sld [smem:[#allocation2 + $0xb5]]
        %s384 = sld [smem:[#allocation2 + $0xb6]]
        %s385 = sld [smem:[#allocation2 + $0xb7]]
        %s386 = sld [smem:[#allocation2 + $0xb8]]
        %s387 = sld [smem:[#allocation2 + $0xb9]]
        %s388 = sld [smem:[#allocation2 + $0xba]]
        %s389 = sld [smem:[#allocation2 + $0xbb]]
        %s390 = sld [smem:[#allocation2 + $0xbc]]
        %s391 = sld [smem:[#allocation2 + $0xbd]]
        %s392 = sld [smem:[#allocation2 + $0xbe]]
        %s393 = sld [smem:[#allocation2 + $0xbf]]
        %s394 = sld [smem:[#allocation2 + $0xc0]]
        %s395 = sld [smem:[#allocation2 + $0xc1]]
        %s396 = sld [smem:[#allocation2 + $0xc2]]
        %s397 = sld [smem:[#allocation2 + $0xc3]]
        %s398 = sld [smem:[#allocation2 + $0xc4]]
        %s399 = sld [smem:[#allocation2 + $0xc5]]
        %s400 = sld [smem:[#allocation2 + $0xc6]]
        %s401 = sld [smem:[#allocation2 + $0xc7]]
        %s402 = sld [smem:[#allocation2 + $0xc8]]
        %s403 = sld [smem:[#allocation2 + $0xc9]]
        %s404 = sld [smem:[#allocation2 + $0xca]]
        %s405 = sld [smem:[#allocation2 + $0xcb]]
        %s406 = sld [smem:[#allocation2 + $0xcc]]
        %s407 = sld [smem:[#allocation2 + $0xcd]]
        %s408 = sld [smem:[#allocation2 + $0xce]]
        %s409 = sld [smem:[#allocation2 + $0xcf]]
        %s410 = sld [smem:[#allocation2 + $0xd0]]
        %s411 = sld [smem:[#allocation2 + $0xd1]]
        %s412 = sld [smem:[#allocation2 + $0xd2]]
        %s413 = sld [smem:[#allocation2 + $0xd3]]
        %s414 = sld [smem:[#allocation2 + $0xd4]]
        %s415 = sld [smem:[#allocation2 + $0xd5]]
        %s416 = sld [smem:[#allocation2 + $0xd6]]
        %s417 = sld [smem:[#allocation2 + $0xd7]]
        %s418 = sld [smem:[#allocation2 + $0xd8]]
        %s419 = sld [smem:[#allocation2 + $0xd9]]
        %s420 = sld [smem:[#allocation2 + $0xda]]
        %s421 = sld [smem:[#allocation2 + $0xdb]]
        %s422 = sld [smem:[#allocation2 + $0xdc]]
        %s423 = sld [smem:[#allocation2 + $0xdd]]
        %s424 = sld [smem:[#allocation2 + $0xde]]
        %s425 = sld [smem:[#allocation2 + $0xdf]]
        %s426 = sld [smem:[#allocation2 + $0xe0]]
        %s427 = sld [smem:[#allocation2 + $0xe1]]
        %s428 = sld [smem:[#allocation2 + $0xe2]]
        %s429 = sld [smem:[#allocation2 + $0xe3]]
        %s430 = sld [smem:[#allocation2 + $0xe4]]
        %s431 = sld [smem:[#allocation2 + $0xe5]]
        %s432 = sld [smem:[#allocation2 + $0xe6]]
        %s433 = sld [smem:[#allocation2 + $0xe7]]
        %s434 = sld [smem:[#allocation2 + $0xe8]]
        %s435 = sld [smem:[#allocation2 + $0xe9]]
        %s436 = sld [smem:[#allocation2 + $0xea]]
        %s437 = sld [smem:[#allocation2 + $0xeb]]
        loop: start=0, step=1, limit=2
        $region37: #{tpu_custom_call.1} parent=27 // loop_pre_header
          _
        $region38: #{tpu_custom_call.1} parent=27 // loop_header
          %s439 = sphi 0, %s443
          %p440 = scmp.ge.s32.totalorder %s439, 2
        $region39: #{tpu_custom_call.1} parent=27 // loop_header_branch
          %442 = sbr.rel (%p440) target = $region43
        $region40: #{tpu_custom_call.1} parent=27 // loop_body
          %s444 = smul.u32 %s439, 2
          %s445 = smul.addr %s444, 8
          %s446 = scalar_lea.vmem %s178, %s445 [#allocation6]
          %v447 = vld [vmem:[%s446] sm:$0xff]
          %v448 = vld [vmem:[%s446 + $0x8] sm:$0xff]
          %s449 = sadd.s32 %s444, 4
          %s450 = smul.addr %s449, 8
          %s451 = scalar_lea.vmem %s178, %s450 [#allocation6]
          %v452 = vld [vmem:[%s451] sm:$0xff]
          %v453 = vld [vmem:[%s451 + $0x8] sm:$0xff]
          %s454 = sadd.s32 %s444, 8
          %s455 = smul.addr %s454, 8
          %s456 = scalar_lea.vmem %s178, %s455 [#allocation6]
          %v457 = vld [vmem:[%s456] sm:$0xff]
          %v458 = vld [vmem:[%s456 + $0x8] sm:$0xff]
          %s459 = sadd.s32 %s444, 12
          %s460 = smul.addr %s459, 8
          %s461 = scalar_lea.vmem %s178, %s460 [#allocation6]
          %v462 = vld [vmem:[%s461] sm:$0xff]
          %v463 = vld [vmem:[%s461 + $0x8] sm:$0xff]
          %v464 = vstv %s202
          %v465 = vmul.f32 %v447, %v464
          %v466 = vmul.f32 %v448, %v464
          %v467 = vstv %s203
          %v468 = vmul.f32 %v452, %v467
          %v469 = vmul.f32 %v453, %v467
          %v470 = vadd.f32 %v465, %v468
          %v471 = vadd.f32 %v466, %v469
          %v472 = vstv %s204
          %v473 = vmul.f32 %v457, %v472
          %v474 = vmul.f32 %v458, %v472
          %v475 = vadd.f32 %v470, %v473
          %v476 = vadd.f32 %v471, %v474
          %v477 = vstv %s205
          %v478 = vmul.f32 %v462, %v477
          %v479 = vmul.f32 %v463, %v477
          %v480 = vadd.f32 %v475, %v478
          %v481 = vadd.f32 %v476, %v479
          %v482 = vstv %s242
          %v483 = vadd.f32 %v480, %v482
          %v484 = vadd.f32 %v481, %v482
          %v485 = vmax.f32 %v483, 0.0
          %v486 = vmax.f32 %v484, 0.0
          %v487 = vstv %s206
          %v488 = vmul.f32 %v447, %v487
          %v489 = vmul.f32 %v448, %v487
          %v490 = vstv %s207
          %v491 = vmul.f32 %v452, %v490
          %v492 = vmul.f32 %v453, %v490
          %v493 = vadd.f32 %v488, %v491
          %v494 = vadd.f32 %v489, %v492
          %v495 = vstv %s208
          %v496 = vmul.f32 %v457, %v495
          %v497 = vmul.f32 %v458, %v495
          %v498 = vadd.f32 %v493, %v496
          %v499 = vadd.f32 %v494, %v497
          %v500 = vstv %s209
          %v501 = vmul.f32 %v462, %v500
          %v502 = vmul.f32 %v463, %v500
          %v503 = vadd.f32 %v498, %v501
          %v504 = vadd.f32 %v499, %v502
          %v505 = vstv %s243
          %v506 = vadd.f32 %v503, %v505
          %v507 = vadd.f32 %v504, %v505
          %v508 = vmax.f32 %v506, 0.0
          %v509 = vmax.f32 %v507, 0.0
          %v510 = vstv %s210
          %v511 = vmul.f32 %v447, %v510
          %v512 = vmul.f32 %v448, %v510
          %v513 = vstv %s211
          %v514 = vmul.f32 %v452, %v513
          %v515 = vmul.f32 %v453, %v513
          %v516 = vadd.f32 %v511, %v514
          %v517 = vadd.f32 %v512, %v515
          %v518 = vstv %s212
          %v519 = vmul.f32 %v457, %v518
          %v520 = vmul.f32 %v458, %v518
          %v521 = vadd.f32 %v516, %v519
          %v522 = vadd.f32 %v517, %v520
          %v523 = vstv %s213
          %v524 = vmul.f32 %v462, %v523
          %v525 = vmul.f32 %v463, %v523
          %v526 = vadd.f32 %v521, %v524
          %v527 = vadd.f32 %v522, %v525
          %v528 = vstv %s244
          %v529 = vadd.f32 %v526, %v528
          %v530 = vadd.f32 %v527, %v528
          %v531 = vmax.f32 %v529, 0.0
          %v532 = vmax.f32 %v530, 0.0
          %v533 = vstv %s214
          %v534 = vmul.f32 %v447, %v533
          %v535 = vmul.f32 %v448, %v533
          %v536 = vstv %s215
          %v537 = vmul.f32 %v452, %v536
          %v538 = vmul.f32 %v453, %v536
          %v539 = vadd.f32 %v534, %v537
          %v540 = vadd.f32 %v535, %v538
          %v541 = vstv %s216
          %v542 = vmul.f32 %v457, %v541
          %v543 = vmul.f32 %v458, %v541
          %v544 = vadd.f32 %v539, %v542
          %v545 = vadd.f32 %v540, %v543
          %v546 = vstv %s217
          %v547 = vmul.f32 %v462, %v546
          %v548 = vmul.f32 %v463, %v546
          %v549 = vadd.f32 %v544, %v547
          %v550 = vadd.f32 %v545, %v548
          %v551 = vstv %s245
          %v552 = vadd.f32 %v549, %v551
          %v553 = vadd.f32 %v550, %v551
          %v554 = vmax.f32 %v552, 0.0
          %v555 = vmax.f32 %v553, 0.0
          %v556 = vstv %s218
          %v557 = vmul.f32 %v447, %v556
          %v558 = vmul.f32 %v448, %v556
          %v559 = vstv %s219
          %v560 = vmul.f32 %v452, %v559
          %v561 = vmul.f32 %v453, %v559
          %v562 = vadd.f32 %v557, %v560
          %v563 = vadd.f32 %v558, %v561
          %v564 = vstv %s220
          %v565 = vmul.f32 %v457, %v564
          %v566 = vmul.f32 %v458, %v564
          %v567 = vadd.f32 %v562, %v565
          %v568 = vadd.f32 %v563, %v566
          %v569 = vstv %s221
          %v570 = vmul.f32 %v462, %v569
          %v571 = vmul.f32 %v463, %v569
          %v572 = vadd.f32 %v567, %v570
          %v573 = vadd.f32 %v568, %v571
          %v574 = vstv %s246
          %v575 = vadd.f32 %v572, %v574
          %v576 = vadd.f32 %v573, %v574
          %v577 = vmax.f32 %v575, 0.0
          %v578 = vmax.f32 %v576, 0.0
          %v579 = vstv %s222
          %v580 = vmul.f32 %v447, %v579
          %v581 = vmul.f32 %v448, %v579
          %v582 = vstv %s223
          %v583 = vmul.f32 %v452, %v582
          %v584 = vmul.f32 %v453, %v582
          %v585 = vadd.f32 %v580, %v583
          %v586 = vadd.f32 %v581, %v584
          %v587 = vstv %s224
          %v588 = vmul.f32 %v457, %v587
          %v589 = vmul.f32 %v458, %v587
          %v590 = vadd.f32 %v585, %v588
          %v591 = vadd.f32 %v586, %v589
          %v592 = vstv %s225
          %v593 = vmul.f32 %v462, %v592
          %v594 = vmul.f32 %v463, %v592
          %v595 = vadd.f32 %v590, %v593
          %v596 = vadd.f32 %v591, %v594
          %v597 = vstv %s247
          %v598 = vadd.f32 %v595, %v597
          %v599 = vadd.f32 %v596, %v597
          %v600 = vmax.f32 %v598, 0.0
          %v601 = vmax.f32 %v599, 0.0
          %v602 = vstv %s226
          %v603 = vmul.f32 %v447, %v602
          %v604 = vmul.f32 %v448, %v602
          %v605 = vstv %s227
          %v606 = vmul.f32 %v452, %v605
          %v607 = vmul.f32 %v453, %v605
          %v608 = vadd.f32 %v603, %v606
          %v609 = vadd.f32 %v604, %v607
          %v610 = vstv %s228
          %v611 = vmul.f32 %v457, %v610
          %v612 = vmul.f32 %v458, %v610
          %v613 = vadd.f32 %v608, %v611
          %v614 = vadd.f32 %v609, %v612
          %v615 = vstv %s229
          %v616 = vmul.f32 %v462, %v615
          %v617 = vmul.f32 %v463, %v615
          %v618 = vadd.f32 %v613, %v616
          %v619 = vadd.f32 %v614, %v617
          %v620 = vstv %s248
          %v621 = vadd.f32 %v618, %v620
          %v622 = vadd.f32 %v619, %v620
          %v623 = vmax.f32 %v621, 0.0
          %v624 = vmax.f32 %v622, 0.0
          %v625 = vstv %s230
          %v626 = vmul.f32 %v447, %v625
          %v627 = vmul.f32 %v448, %v625
          %v628 = vstv %s231
          %v629 = vmul.f32 %v452, %v628
          %v630 = vmul.f32 %v453, %v628
          %v631 = vadd.f32 %v626, %v629
          %v632 = vadd.f32 %v627, %v630
          %v633 = vstv %s232
          %v634 = vmul.f32 %v457, %v633
          %v635 = vmul.f32 %v458, %v633
          %v636 = vadd.f32 %v631, %v634
          %v637 = vadd.f32 %v632, %v635
          %v638 = vstv %s233
          %v639 = vmul.f32 %v462, %v638
          %v640 = vmul.f32 %v463, %v638
          %v641 = vadd.f32 %v636, %v639
          %v642 = vadd.f32 %v637, %v640
          %v643 = vstv %s249
          %v644 = vadd.f32 %v641, %v643
          %v645 = vadd.f32 %v642, %v643
          %v646 = vmax.f32 %v644, 0.0
          %v647 = vmax.f32 %v645, 0.0
          %v648 = vstv %s234
          %v649 = vmul.f32 %v447, %v648
          %v650 = vmul.f32 %v448, %v648
          %v651 = vstv %s235
          %v652 = vmul.f32 %v452, %v651
          %v653 = vmul.f32 %v453, %v651
          %v654 = vadd.f32 %v649, %v652
          %v655 = vadd.f32 %v650, %v653
          %v656 = vstv %s236
          %v657 = vmul.f32 %v457, %v656
          %v658 = vmul.f32 %v458, %v656
          %v659 = vadd.f32 %v654, %v657
          %v660 = vadd.f32 %v655, %v658
          %v661 = vstv %s237
          %v662 = vmul.f32 %v462, %v661
          %v663 = vmul.f32 %v463, %v661
          %v664 = vadd.f32 %v659, %v662
          %v665 = vadd.f32 %v660, %v663
          %v666 = vstv %s250
          %v667 = vadd.f32 %v664, %v666
          %v668 = vadd.f32 %v665, %v666
          %v669 = vmax.f32 %v667, 0.0
          %v670 = vmax.f32 %v668, 0.0
          %v671 = vstv %s238
          %v672 = vmul.f32 %v447, %v671
          %v673 = vmul.f32 %v448, %v671
          %v674 = vstv %s239
          %v675 = vmul.f32 %v452, %v674
          %v676 = vmul.f32 %v453, %v674
          %v677 = vadd.f32 %v672, %v675
          %v678 = vadd.f32 %v673, %v676
          %v679 = vstv %s240
          %v680 = vmul.f32 %v457, %v679
          %v681 = vmul.f32 %v458, %v679
          %v682 = vadd.f32 %v677, %v680
          %v683 = vadd.f32 %v678, %v681
          %v684 = vstv %s241
          %v685 = vmul.f32 %v462, %v684
          %v686 = vmul.f32 %v463, %v684
          %v687 = vadd.f32 %v682, %v685
          %v688 = vadd.f32 %v683, %v686
          %v689 = vstv %s251
          %v690 = vadd.f32 %v687, %v689
          %v691 = vadd.f32 %v688, %v689
          %v692 = vmax.f32 %v690, 0.0
          %v693 = vmax.f32 %v691, 0.0
          %v694 = vstv %s252
          %v695 = vmul.f32 %v485, %v694
          %v696 = vmul.f32 %v486, %v694
          %v697 = vstv %s253
          %v698 = vmul.f32 %v508, %v697
          %v699 = vmul.f32 %v509, %v697
          %v700 = vadd.f32 %v695, %v698
          %v701 = vadd.f32 %v696, %v699
          %v702 = vstv %s254
          %v703 = vmul.f32 %v531, %v702
          %v704 = vmul.f32 %v532, %v702
          %v705 = vadd.f32 %v700, %v703
          %v706 = vadd.f32 %v701, %v704
          %v707 = vstv %s255
          %v708 = vmul.f32 %v554, %v707
          %v709 = vmul.f32 %v555, %v707
          %v710 = vadd.f32 %v705, %v708
          %v711 = vadd.f32 %v706, %v709
          %v712 = vstv %s256
          %v713 = vmul.f32 %v577, %v712
          %v714 = vmul.f32 %v578, %v712
          %v715 = vadd.f32 %v710, %v713
          %v716 = vadd.f32 %v711, %v714
          %v717 = vstv %s257
          %v718 = vmul.f32 %v600, %v717
          %v719 = vmul.f32 %v601, %v717
          %v720 = vadd.f32 %v715, %v718
          %v721 = vadd.f32 %v716, %v719
          %v722 = vstv %s258
          %v723 = vmul.f32 %v623, %v722
          %v724 = vmul.f32 %v624, %v722
          %v725 = vadd.f32 %v720, %v723
          %v726 = vadd.f32 %v721, %v724
          %v727 = vstv %s259
          %v728 = vmul.f32 %v646, %v727
          %v729 = vmul.f32 %v647, %v727
          %v730 = vadd.f32 %v725, %v728
          %v731 = vadd.f32 %v726, %v729
          %v732 = vstv %s260
          %v733 = vmul.f32 %v669, %v732
          %v734 = vmul.f32 %v670, %v732
          %v735 = vadd.f32 %v730, %v733
          %v736 = vadd.f32 %v731, %v734
          %v737 = vstv %s261
          %v738 = vmul.f32 %v692, %v737
          %v739 = vmul.f32 %v693, %v737
          %v740 = vadd.f32 %v735, %v738
          %v741 = vadd.f32 %v736, %v739
          %v742 = vstv %s302
          %v743 = vadd.f32 %v740, %v742
          %v744 = vadd.f32 %v741, %v742
          %v745 = vmax.f32 %v743, 0.0
          %v746 = vmax.f32 %v744, 0.0
          %v747 = vstv %s262
          %v748 = vmul.f32 %v485, %v747
          %v749 = vmul.f32 %v486, %v747
          %v750 = vstv %s263
          %v751 = vmul.f32 %v508, %v750
          %v752 = vmul.f32 %v509, %v750
          %v753 = vadd.f32 %v748, %v751
          %v754 = vadd.f32 %v749, %v752
          %v755 = vstv %s264
          %v756 = vmul.f32 %v531, %v755
          %v757 = vmul.f32 %v532, %v755
          %v758 = vadd.f32 %v753, %v756
          %v759 = vadd.f32 %v754, %v757
          %v760 = vstv %s265
          %v761 = vmul.f32 %v554, %v760
          %v762 = vmul.f32 %v555, %v760
          %v763 = vadd.f32 %v758, %v761
          %v764 = vadd.f32 %v759, %v762
          %v765 = vstv %s266
          %v766 = vmul.f32 %v577, %v765
          %v767 = vmul.f32 %v578, %v765
          %v768 = vadd.f32 %v763, %v766
          %v769 = vadd.f32 %v764, %v767
          %v770 = vstv %s267
          %v771 = vmul.f32 %v600, %v770
          %v772 = vmul.f32 %v601, %v770
          %v773 = vadd.f32 %v768, %v771
          %v774 = vadd.f32 %v769, %v772
          %v775 = vstv %s268
          %v776 = vmul.f32 %v623, %v775
          %v777 = vmul.f32 %v624, %v775
          %v778 = vadd.f32 %v773, %v776
          %v779 = vadd.f32 %v774, %v777
          %v780 = vstv %s269
          %v781 = vmul.f32 %v646, %v780
          %v782 = vmul.f32 %v647, %v780
          %v783 = vadd.f32 %v778, %v781
          %v784 = vadd.f32 %v779, %v782
          %v785 = vstv %s270
          %v786 = vmul.f32 %v669, %v785
          %v787 = vmul.f32 %v670, %v785
          %v788 = vadd.f32 %v783, %v786
          %v789 = vadd.f32 %v784, %v787
          %v790 = vstv %s271
          %v791 = vmul.f32 %v692, %v790
          %v792 = vmul.f32 %v693, %v790
          %v793 = vadd.f32 %v788, %v791
          %v794 = vadd.f32 %v789, %v792
          %v795 = vstv %s303
          %v796 = vadd.f32 %v793, %v795
          %v797 = vadd.f32 %v794, %v795
          %v798 = vmax.f32 %v796, 0.0
          %v799 = vmax.f32 %v797, 0.0
          %v800 = vstv %s272
          %v801 = vmul.f32 %v485, %v800
          %v802 = vmul.f32 %v486, %v800
          %v803 = vstv %s273
          %v804 = vmul.f32 %v508, %v803
          %v805 = vmul.f32 %v509, %v803
          %v806 = vadd.f32 %v801, %v804
          %v807 = vadd.f32 %v802, %v805
          %v808 = vstv %s274
          %v809 = vmul.f32 %v531, %v808
          %v810 = vmul.f32 %v532, %v808
          %v811 = vadd.f32 %v806, %v809
          %v812 = vadd.f32 %v807, %v810
          %v813 = vstv %s275
          %v814 = vmul.f32 %v554, %v813
          %v815 = vmul.f32 %v555, %v813
          %v816 = vadd.f32 %v811, %v814
          %v817 = vadd.f32 %v812, %v815
          %v818 = vstv %s276
          %v819 = vmul.f32 %v577, %v818
          %v820 = vmul.f32 %v578, %v818
          %v821 = vadd.f32 %v816, %v819
          %v822 = vadd.f32 %v817, %v820
          %v823 = vstv %s277
          %v824 = vmul.f32 %v600, %v823
          %v825 = vmul.f32 %v601, %v823
          %v826 = vadd.f32 %v821, %v824
          %v827 = vadd.f32 %v822, %v825
          %v828 = vstv %s278
          %v829 = vmul.f32 %v623, %v828
          %v830 = vmul.f32 %v624, %v828
          %v831 = vadd.f32 %v826, %v829
          %v832 = vadd.f32 %v827, %v830
          %v833 = vstv %s279
          %v834 = vmul.f32 %v646, %v833
          %v835 = vmul.f32 %v647, %v833
          %v836 = vadd.f32 %v831, %v834
          %v837 = vadd.f32 %v832, %v835
          %v838 = vstv %s280
          %v839 = vmul.f32 %v669, %v838
          %v840 = vmul.f32 %v670, %v838
          %v841 = vadd.f32 %v836, %v839
          %v842 = vadd.f32 %v837, %v840
          %v843 = vstv %s281
          %v844 = vmul.f32 %v692, %v843
          %v845 = vmul.f32 %v693, %v843
          %v846 = vadd.f32 %v841, %v844
          %v847 = vadd.f32 %v842, %v845
          %v848 = vstv %s304
          %v849 = vadd.f32 %v846, %v848
          %v850 = vadd.f32 %v847, %v848
          %v851 = vmax.f32 %v849, 0.0
          %v852 = vmax.f32 %v850, 0.0
          %v853 = vstv %s282
          %v854 = vmul.f32 %v485, %v853
          %v855 = vmul.f32 %v486, %v853
          %v856 = vstv %s283
          %v857 = vmul.f32 %v508, %v856
          %v858 = vmul.f32 %v509, %v856
          %v859 = vadd.f32 %v854, %v857
          %v860 = vadd.f32 %v855, %v858
          %v861 = vstv %s284
          %v862 = vmul.f32 %v531, %v861
          %v863 = vmul.f32 %v532, %v861
          %v864 = vadd.f32 %v859, %v862
          %v865 = vadd.f32 %v860, %v863
          %v866 = vstv %s285
          %v867 = vmul.f32 %v554, %v866
          %v868 = vmul.f32 %v555, %v866
          %v869 = vadd.f32 %v864, %v867
          %v870 = vadd.f32 %v865, %v868
          %v871 = vstv %s286
          %v872 = vmul.f32 %v577, %v871
          %v873 = vmul.f32 %v578, %v871
          %v874 = vadd.f32 %v869, %v872
          %v875 = vadd.f32 %v870, %v873
          %v876 = vstv %s287
          %v877 = vmul.f32 %v600, %v876
          %v878 = vmul.f32 %v601, %v876
          %v879 = vadd.f32 %v874, %v877
          %v880 = vadd.f32 %v875, %v878
          %v881 = vstv %s288
          %v882 = vmul.f32 %v623, %v881
          %v883 = vmul.f32 %v624, %v881
          %v884 = vadd.f32 %v879, %v882
          %v885 = vadd.f32 %v880, %v883
          %v886 = vstv %s289
          %v887 = vmul.f32 %v646, %v886
          %v888 = vmul.f32 %v647, %v886
          %v889 = vadd.f32 %v884, %v887
          %v890 = vadd.f32 %v885, %v888
          %v891 = vstv %s290
          %v892 = vmul.f32 %v669, %v891
          %v893 = vmul.f32 %v670, %v891
          %v894 = vadd.f32 %v889, %v892
          %v895 = vadd.f32 %v890, %v893
          %v896 = vstv %s291
          %v897 = vmul.f32 %v692, %v896
          %v898 = vmul.f32 %v693, %v896
          %v899 = vadd.f32 %v894, %v897
          %v900 = vadd.f32 %v895, %v898
          %v901 = vstv %s305
          %v902 = vadd.f32 %v899, %v901
          %v903 = vadd.f32 %v900, %v901
          %v904 = vmax.f32 %v902, 0.0
          %v905 = vmax.f32 %v903, 0.0
          %v906 = vstv %s292
          %v907 = vmul.f32 %v485, %v906
          %v908 = vmul.f32 %v486, %v906
          %v909 = vstv %s293
          %v910 = vmul.f32 %v508, %v909
          %v911 = vmul.f32 %v509, %v909
          %v912 = vadd.f32 %v907, %v910
          %v913 = vadd.f32 %v908, %v911
          %v914 = vstv %s294
          %v915 = vmul.f32 %v531, %v914
          %v916 = vmul.f32 %v532, %v914
          %v917 = vadd.f32 %v912, %v915
          %v918 = vadd.f32 %v913, %v916
          %v919 = vstv %s295
          %v920 = vmul.f32 %v554, %v919
          %v921 = vmul.f32 %v555, %v919
          %v922 = vadd.f32 %v917, %v920
          %v923 = vadd.f32 %v918, %v921
          %v924 = vstv %s296
          %v925 = vmul.f32 %v577, %v924
          %v926 = vmul.f32 %v578, %v924
          %v927 = vadd.f32 %v922, %v925
          %v928 = vadd.f32 %v923, %v926
          %v929 = vstv %s297
          %v930 = vmul.f32 %v600, %v929
          %v931 = vmul.f32 %v601, %v929
          %v932 = vadd.f32 %v927, %v930
          %v933 = vadd.f32 %v928, %v931
          %v934 = vstv %s298
          %v935 = vmul.f32 %v623, %v934
          %v936 = vmul.f32 %v624, %v934
          %v937 = vadd.f32 %v932, %v935
          %v938 = vadd.f32 %v933, %v936
          %v939 = vstv %s299
          %v940 = vmul.f32 %v646, %v939
          %v941 = vmul.f32 %v647, %v939
          %v942 = vadd.f32 %v937, %v940
          %v943 = vadd.f32 %v938, %v941
          %v944 = vstv %s300
          %v945 = vmul.f32 %v669, %v944
          %v946 = vmul.f32 %v670, %v944
          %v947 = vadd.f32 %v942, %v945
          %v948 = vadd.f32 %v943, %v946
          %v949 = vstv %s301
          %v950 = vmul.f32 %v692, %v949
          %v951 = vmul.f32 %v693, %v949
          %v952 = vadd.f32 %v947, %v950
          %v953 = vadd.f32 %v948, %v951
          %v954 = vstv %s306
          %v955 = vadd.f32 %v952, %v954
          %v956 = vadd.f32 %v953, %v954
          %v957 = vmax.f32 %v955, 0.0
          %v958 = vmax.f32 %v956, 0.0
          %v959 = vstv %s307
          %v960 = vmul.f32 %v745, %v959
          %v961 = vmul.f32 %v746, %v959
          %v962 = vstv %s308
          %v963 = vmul.f32 %v798, %v962
          %v964 = vmul.f32 %v799, %v962
          %v965 = vadd.f32 %v960, %v963
          %v966 = vadd.f32 %v961, %v964
          %v967 = vstv %s309
          %v968 = vmul.f32 %v851, %v967
          %v969 = vmul.f32 %v852, %v967
          %v970 = vadd.f32 %v965, %v968
          %v971 = vadd.f32 %v966, %v969
          %v972 = vstv %s310
          %v973 = vmul.f32 %v904, %v972
          %v974 = vmul.f32 %v905, %v972
          %v975 = vadd.f32 %v970, %v973
          %v976 = vadd.f32 %v971, %v974
          %v977 = vstv %s311
          %v978 = vmul.f32 %v957, %v977
          %v979 = vmul.f32 %v958, %v977
          %v980 = vadd.f32 %v975, %v978
          %v981 = vadd.f32 %v976, %v979
          %v982 = vstv %s317
          %v983 = vadd.f32 %v980, %v982
          %v984 = vadd.f32 %v981, %v982
          %v985 = vstv %s312
          %v986 = vmul.f32 %v745, %v985
          %v987 = vmul.f32 %v746, %v985
          %v988 = vstv %s313
          %v989 = vmul.f32 %v798, %v988
          %v990 = vmul.f32 %v799, %v988
          %v991 = vadd.f32 %v986, %v989
          %v992 = vadd.f32 %v987, %v990
          %v993 = vstv %s314
          %v994 = vmul.f32 %v851, %v993
          %v995 = vmul.f32 %v852, %v993
          %v996 = vadd.f32 %v991, %v994
          %v997 = vadd.f32 %v992, %v995
          %v998 = vstv %s315
          %v999 = vmul.f32 %v904, %v998
          %v1000 = vmul.f32 %v905, %v998
          %v1001 = vadd.f32 %v996, %v999
          %v1002 = vadd.f32 %v997, %v1000
          %v1003 = vstv %s316
          %v1004 = vmul.f32 %v957, %v1003
          %v1005 = vmul.f32 %v958, %v1003
          %v1006 = vadd.f32 %v1001, %v1004
          %v1007 = vadd.f32 %v1002, %v1005
          %v1008 = vstv %s318
          %v1009 = vadd.f32 %v1006, %v1008
          %v1010 = vadd.f32 %v1007, %v1008
          %v1011 = vstv %s319
          %v1012 = vmul.f32 %v983, %v1011
          %v1013 = vmul.f32 %v984, %v1011
          %v1014 = vstv %s320
          %v1015 = vmul.f32 %v1009, %v1014
          %v1016 = vmul.f32 %v1010, %v1014
          %v1017 = vadd.f32 %v1012, %v1015
          %v1018 = vadd.f32 %v1013, %v1016
          %v1019 = vstv %s329
          %v1020 = vadd.f32 %v1017, %v1019
          %v1021 = vadd.f32 %v1018, %v1019
          %v1022 = vmax.f32 %v1020, 0.0
          %v1023 = vmax.f32 %v1021, 0.0
          %v1024 = vstv %s321
          %v1025 = vmul.f32 %v983, %v1024
          %v1026 = vmul.f32 %v984, %v1024
          %v1027 = vstv %s322
          %v1028 = vmul.f32 %v1009, %v1027
          %v1029 = vmul.f32 %v1010, %v1027
          %v1030 = vadd.f32 %v1025, %v1028
          %v1031 = vadd.f32 %v1026, %v1029
          %v1032 = vstv %s330
          %v1033 = vadd.f32 %v1030, %v1032
          %v1034 = vadd.f32 %v1031, %v1032
          %v1035 = vmax.f32 %v1033, 0.0
          %v1036 = vmax.f32 %v1034, 0.0
          %v1037 = vstv %s323
          %v1038 = vmul.f32 %v983, %v1037
          %v1039 = vmul.f32 %v984, %v1037
          %v1040 = vstv %s324
          %v1041 = vmul.f32 %v1009, %v1040
          %v1042 = vmul.f32 %v1010, %v1040
          %v1043 = vadd.f32 %v1038, %v1041
          %v1044 = vadd.f32 %v1039, %v1042
          %v1045 = vstv %s331
          %v1046 = vadd.f32 %v1043, %v1045
          %v1047 = vadd.f32 %v1044, %v1045
          %v1048 = vmax.f32 %v1046, 0.0
          %v1049 = vmax.f32 %v1047, 0.0
          %v1050 = vstv %s325
          %v1051 = vmul.f32 %v983, %v1050
          %v1052 = vmul.f32 %v984, %v1050
          %v1053 = vstv %s326
          %v1054 = vmul.f32 %v1009, %v1053
          %v1055 = vmul.f32 %v1010, %v1053
          %v1056 = vadd.f32 %v1051, %v1054
          %v1057 = vadd.f32 %v1052, %v1055
          %v1058 = vstv %s332
          %v1059 = vadd.f32 %v1056, %v1058
          %v1060 = vadd.f32 %v1057, %v1058
          %v1061 = vmax.f32 %v1059, 0.0
          %v1062 = vmax.f32 %v1060, 0.0
          %v1063 = vstv %s327
          %v1064 = vmul.f32 %v983, %v1063
          %v1065 = vmul.f32 %v984, %v1063
          %v1066 = vstv %s328
          %v1067 = vmul.f32 %v1009, %v1066
          %v1068 = vmul.f32 %v1010, %v1066
          %v1069 = vadd.f32 %v1064, %v1067
          %v1070 = vadd.f32 %v1065, %v1068
          %v1071 = vstv %s333
          %v1072 = vadd.f32 %v1069, %v1071
          %v1073 = vadd.f32 %v1070, %v1071
          %v1074 = vmax.f32 %v1072, 0.0
          %v1075 = vmax.f32 %v1073, 0.0
          %v1076 = vstv %s334
          %v1077 = vmul.f32 %v1022, %v1076
          %v1078 = vmul.f32 %v1023, %v1076
          %v1079 = vstv %s335
          %v1080 = vmul.f32 %v1035, %v1079
          %v1081 = vmul.f32 %v1036, %v1079
          %v1082 = vadd.f32 %v1077, %v1080
          %v1083 = vadd.f32 %v1078, %v1081
          %v1084 = vstv %s336
          %v1085 = vmul.f32 %v1048, %v1084
          %v1086 = vmul.f32 %v1049, %v1084
          %v1087 = vadd.f32 %v1082, %v1085
          %v1088 = vadd.f32 %v1083, %v1086
          %v1089 = vstv %s337
          %v1090 = vmul.f32 %v1061, %v1089
          %v1091 = vmul.f32 %v1062, %v1089
          %v1092 = vadd.f32 %v1087, %v1090
          %v1093 = vadd.f32 %v1088, %v1091
          %v1094 = vstv %s338
          %v1095 = vmul.f32 %v1074, %v1094
          %v1096 = vmul.f32 %v1075, %v1094
          %v1097 = vadd.f32 %v1092, %v1095
          %v1098 = vadd.f32 %v1093, %v1096
          %v1099 = vstv %s384
          %v1100 = vadd.f32 %v1097, %v1099
          %v1101 = vadd.f32 %v1098, %v1099
          %v1102 = vmax.f32 %v1100, 0.0
          %v1103 = vmax.f32 %v1101, 0.0
          %v1104 = vstv %s339
          %v1105 = vmul.f32 %v1022, %v1104
          %v1106 = vmul.f32 %v1023, %v1104
          %v1107 = vstv %s340
          %v1108 = vmul.f32 %v1035, %v1107
          %v1109 = vmul.f32 %v1036, %v1107
          %v1110 = vadd.f32 %v1105, %v1108
          %v1111 = vadd.f32 %v1106, %v1109
          %v1112 = vstv %s341
          %v1113 = vmul.f32 %v1048, %v1112
          %v1114 = vmul.f32 %v1049, %v1112
          %v1115 = vadd.f32 %v1110, %v1113
          %v1116 = vadd.f32 %v1111, %v1114
          %v1117 = vstv %s342
          %v1118 = vmul.f32 %v1061, %v1117
          %v1119 = vmul.f32 %v1062, %v1117
          %v1120 = vadd.f32 %v1115, %v1118
          %v1121 = vadd.f32 %v1116, %v1119
          %v1122 = vstv %s343
          %v1123 = vmul.f32 %v1074, %v1122
          %v1124 = vmul.f32 %v1075, %v1122
          %v1125 = vadd.f32 %v1120, %v1123
          %v1126 = vadd.f32 %v1121, %v1124
          %v1127 = vstv %s385
          %v1128 = vadd.f32 %v1125, %v1127
          %v1129 = vadd.f32 %v1126, %v1127
          %v1130 = vmax.f32 %v1128, 0.0
          %v1131 = vmax.f32 %v1129, 0.0
          %v1132 = vstv %s344
          %v1133 = vmul.f32 %v1022, %v1132
          %v1134 = vmul.f32 %v1023, %v1132
          %v1135 = vstv %s345
          %v1136 = vmul.f32 %v1035, %v1135
          %v1137 = vmul.f32 %v1036, %v1135
          %v1138 = vadd.f32 %v1133, %v1136
          %v1139 = vadd.f32 %v1134, %v1137
          %v1140 = vstv %s346
          %v1141 = vmul.f32 %v1048, %v1140
          %v1142 = vmul.f32 %v1049, %v1140
          %v1143 = vadd.f32 %v1138, %v1141
          %v1144 = vadd.f32 %v1139, %v1142
          %v1145 = vstv %s347
          %v1146 = vmul.f32 %v1061, %v1145
          %v1147 = vmul.f32 %v1062, %v1145
          %v1148 = vadd.f32 %v1143, %v1146
          %v1149 = vadd.f32 %v1144, %v1147
          %v1150 = vstv %s348
          %v1151 = vmul.f32 %v1074, %v1150
          %v1152 = vmul.f32 %v1075, %v1150
          %v1153 = vadd.f32 %v1148, %v1151
          %v1154 = vadd.f32 %v1149, %v1152
          %v1155 = vstv %s386
          %v1156 = vadd.f32 %v1153, %v1155
          %v1157 = vadd.f32 %v1154, %v1155
          %v1158 = vmax.f32 %v1156, 0.0
          %v1159 = vmax.f32 %v1157, 0.0
          %v1160 = vstv %s349
          %v1161 = vmul.f32 %v1022, %v1160
          %v1162 = vmul.f32 %v1023, %v1160
          %v1163 = vstv %s350
          %v1164 = vmul.f32 %v1035, %v1163
          %v1165 = vmul.f32 %v1036, %v1163
          %v1166 = vadd.f32 %v1161, %v1164
          %v1167 = vadd.f32 %v1162, %v1165
          %v1168 = vstv %s351
          %v1169 = vmul.f32 %v1048, %v1168
          %v1170 = vmul.f32 %v1049, %v1168
          %v1171 = vadd.f32 %v1166, %v1169
          %v1172 = vadd.f32 %v1167, %v1170
          %v1173 = vstv %s352
          %v1174 = vmul.f32 %v1061, %v1173
          %v1175 = vmul.f32 %v1062, %v1173
          %v1176 = vadd.f32 %v1171, %v1174
          %v1177 = vadd.f32 %v1172, %v1175
          %v1178 = vstv %s353
          %v1179 = vmul.f32 %v1074, %v1178
          %v1180 = vmul.f32 %v1075, %v1178
          %v1181 = vadd.f32 %v1176, %v1179
          %v1182 = vadd.f32 %v1177, %v1180
          %v1183 = vstv %s387
          %v1184 = vadd.f32 %v1181, %v1183
          %v1185 = vadd.f32 %v1182, %v1183
          %v1186 = vmax.f32 %v1184, 0.0
          %v1187 = vmax.f32 %v1185, 0.0
          %v1188 = vstv %s354
          %v1189 = vmul.f32 %v1022, %v1188
          %v1190 = vmul.f32 %v1023, %v1188
          %v1191 = vstv %s355
          %v1192 = vmul.f32 %v1035, %v1191
          %v1193 = vmul.f32 %v1036, %v1191
          %v1194 = vadd.f32 %v1189, %v1192
          %v1195 = vadd.f32 %v1190, %v1193
          %v1196 = vstv %s356
          %v1197 = vmul.f32 %v1048, %v1196
          %v1198 = vmul.f32 %v1049, %v1196
          %v1199 = vadd.f32 %v1194, %v1197
          %v1200 = vadd.f32 %v1195, %v1198
          %v1201 = vstv %s357
          %v1202 = vmul.f32 %v1061, %v1201
          %v1203 = vmul.f32 %v1062, %v1201
          %v1204 = vadd.f32 %v1199, %v1202
          %v1205 = vadd.f32 %v1200, %v1203
          %v1206 = vstv %s358
          %v1207 = vmul.f32 %v1074, %v1206
          %v1208 = vmul.f32 %v1075, %v1206
          %v1209 = vadd.f32 %v1204, %v1207
          %v1210 = vadd.f32 %v1205, %v1208
          %v1211 = vstv %s388
          %v1212 = vadd.f32 %v1209, %v1211
          %v1213 = vadd.f32 %v1210, %v1211
          %v1214 = vmax.f32 %v1212, 0.0
          %v1215 = vmax.f32 %v1213, 0.0
          %v1216 = vstv %s359
          %v1217 = vmul.f32 %v1022, %v1216
          %v1218 = vmul.f32 %v1023, %v1216
          %v1219 = vstv %s360
          %v1220 = vmul.f32 %v1035, %v1219
          %v1221 = vmul.f32 %v1036, %v1219
          %v1222 = vadd.f32 %v1217, %v1220
          %v1223 = vadd.f32 %v1218, %v1221
          %v1224 = vstv %s361
          %v1225 = vmul.f32 %v1048, %v1224
          %v1226 = vmul.f32 %v1049, %v1224
          %v1227 = vadd.f32 %v1222, %v1225
          %v1228 = vadd.f32 %v1223, %v1226
          %v1229 = vstv %s362
          %v1230 = vmul.f32 %v1061, %v1229
          %v1231 = vmul.f32 %v1062, %v1229
          %v1232 = vadd.f32 %v1227, %v1230
          %v1233 = vadd.f32 %v1228, %v1231
          %v1234 = vstv %s363
          %v1235 = vmul.f32 %v1074, %v1234
          %v1236 = vmul.f32 %v1075, %v1234
          %v1237 = vadd.f32 %v1232, %v1235
          %v1238 = vadd.f32 %v1233, %v1236
          %v1239 = vstv %s389
          %v1240 = vadd.f32 %v1237, %v1239
          %v1241 = vadd.f32 %v1238, %v1239
          %v1242 = vmax.f32 %v1240, 0.0
          %v1243 = vmax.f32 %v1241, 0.0
          %v1244 = vstv %s364
          %v1245 = vmul.f32 %v1022, %v1244
          %v1246 = vmul.f32 %v1023, %v1244
          %v1247 = vstv %s365
          %v1248 = vmul.f32 %v1035, %v1247
          %v1249 = vmul.f32 %v1036, %v1247
          %v1250 = vadd.f32 %v1245, %v1248
          %v1251 = vadd.f32 %v1246, %v1249
          %v1252 = vstv %s366
          %v1253 = vmul.f32 %v1048, %v1252
          %v1254 = vmul.f32 %v1049, %v1252
          %v1255 = vadd.f32 %v1250, %v1253
          %v1256 = vadd.f32 %v1251, %v1254
          %v1257 = vstv %s367
          %v1258 = vmul.f32 %v1061, %v1257
          %v1259 = vmul.f32 %v1062, %v1257
          %v1260 = vadd.f32 %v1255, %v1258
          %v1261 = vadd.f32 %v1256, %v1259
          %v1262 = vstv %s368
          %v1263 = vmul.f32 %v1074, %v1262
          %v1264 = vmul.f32 %v1075, %v1262
          %v1265 = vadd.f32 %v1260, %v1263
          %v1266 = vadd.f32 %v1261, %v1264
          %v1267 = vstv %s390
          %v1268 = vadd.f32 %v1265, %v1267
          %v1269 = vadd.f32 %v1266, %v1267
          %v1270 = vmax.f32 %v1268, 0.0
          %v1271 = vmax.f32 %v1269, 0.0
          %v1272 = vstv %s369
          %v1273 = vmul.f32 %v1022, %v1272
          %v1274 = vmul.f32 %v1023, %v1272
          %v1275 = vstv %s370
          %v1276 = vmul.f32 %v1035, %v1275
          %v1277 = vmul.f32 %v1036, %v1275
          %v1278 = vadd.f32 %v1273, %v1276
          %v1279 = vadd.f32 %v1274, %v1277
          %v1280 = vstv %s371
          %v1281 = vmul.f32 %v1048, %v1280
          %v1282 = vmul.f32 %v1049, %v1280
          %v1283 = vadd.f32 %v1278, %v1281
          %v1284 = vadd.f32 %v1279, %v1282
          %v1285 = vstv %s372
          %v1286 = vmul.f32 %v1061, %v1285
          %v1287 = vmul.f32 %v1062, %v1285
          %v1288 = vadd.f32 %v1283, %v1286
          %v1289 = vadd.f32 %v1284, %v1287
          %v1290 = vstv %s373
          %v1291 = vmul.f32 %v1074, %v1290
          %v1292 = vmul.f32 %v1075, %v1290
          %v1293 = vadd.f32 %v1288, %v1291
          %v1294 = vadd.f32 %v1289, %v1292
          %v1295 = vstv %s391
          %v1296 = vadd.f32 %v1293, %v1295
          %v1297 = vadd.f32 %v1294, %v1295
          %v1298 = vmax.f32 %v1296, 0.0
          %v1299 = vmax.f32 %v1297, 0.0
          %v1300 = vstv %s374
          %v1301 = vmul.f32 %v1022, %v1300
          %v1302 = vmul.f32 %v1023, %v1300
          %v1303 = vstv %s375
          %v1304 = vmul.f32 %v1035, %v1303
          %v1305 = vmul.f32 %v1036, %v1303
          %v1306 = vadd.f32 %v1301, %v1304
          %v1307 = vadd.f32 %v1302, %v1305
          %v1308 = vstv %s376
          %v1309 = vmul.f32 %v1048, %v1308
          %v1310 = vmul.f32 %v1049, %v1308
          %v1311 = vadd.f32 %v1306, %v1309
          %v1312 = vadd.f32 %v1307, %v1310
          %v1313 = vstv %s377
          %v1314 = vmul.f32 %v1061, %v1313
          %v1315 = vmul.f32 %v1062, %v1313
          %v1316 = vadd.f32 %v1311, %v1314
          %v1317 = vadd.f32 %v1312, %v1315
          %v1318 = vstv %s378
          %v1319 = vmul.f32 %v1074, %v1318
          %v1320 = vmul.f32 %v1075, %v1318
          %v1321 = vadd.f32 %v1316, %v1319
          %v1322 = vadd.f32 %v1317, %v1320
          %v1323 = vstv %s392
          %v1324 = vadd.f32 %v1321, %v1323
          %v1325 = vadd.f32 %v1322, %v1323
          %v1326 = vmax.f32 %v1324, 0.0
          %v1327 = vmax.f32 %v1325, 0.0
          %v1328 = vstv %s379
          %v1329 = vmul.f32 %v1022, %v1328
          %v1330 = vmul.f32 %v1023, %v1328
          %v1331 = vstv %s380
          %v1332 = vmul.f32 %v1035, %v1331
          %v1333 = vmul.f32 %v1036, %v1331
          %v1334 = vadd.f32 %v1329, %v1332
          %v1335 = vadd.f32 %v1330, %v1333
          %v1336 = vstv %s381
          %v1337 = vmul.f32 %v1048, %v1336
          %v1338 = vmul.f32 %v1049, %v1336
          %v1339 = vadd.f32 %v1334, %v1337
          %v1340 = vadd.f32 %v1335, %v1338
          %v1341 = vstv %s382
          %v1342 = vmul.f32 %v1061, %v1341
          %v1343 = vmul.f32 %v1062, %v1341
          %v1344 = vadd.f32 %v1339, %v1342
          %v1345 = vadd.f32 %v1340, %v1343
          %v1346 = vstv %s383
          %v1347 = vmul.f32 %v1074, %v1346
          %v1348 = vmul.f32 %v1075, %v1346
          %v1349 = vadd.f32 %v1344, %v1347
          %v1350 = vadd.f32 %v1345, %v1348
          %v1351 = vstv %s393
          %v1352 = vadd.f32 %v1349, %v1351
          %v1353 = vadd.f32 %v1350, %v1351
          %v1354 = vmax.f32 %v1352, 0.0
          %v1355 = vmax.f32 %v1353, 0.0
          %v1356 = vstv %s394
          %v1357 = vmul.f32 %v1102, %v1356
          %v1358 = vmul.f32 %v1103, %v1356
          %v1359 = vstv %s395
          %v1360 = vmul.f32 %v1130, %v1359
          %v1361 = vmul.f32 %v1131, %v1359
          %v1362 = vadd.f32 %v1357, %v1360
          %v1363 = vadd.f32 %v1358, %v1361
          %v1364 = vstv %s396
          %v1365 = vmul.f32 %v1158, %v1364
          %v1366 = vmul.f32 %v1159, %v1364
          %v1367 = vadd.f32 %v1362, %v1365
          %v1368 = vadd.f32 %v1363, %v1366
          %v1369 = vstv %s397
          %v1370 = vmul.f32 %v1186, %v1369
          %v1371 = vmul.f32 %v1187, %v1369
          %v1372 = vadd.f32 %v1367, %v1370
          %v1373 = vadd.f32 %v1368, %v1371
          %v1374 = vstv %s398
          %v1375 = vmul.f32 %v1214, %v1374
          %v1376 = vmul.f32 %v1215, %v1374
          %v1377 = vadd.f32 %v1372, %v1375
          %v1378 = vadd.f32 %v1373, %v1376
          %v1379 = vstv %s399
          %v1380 = vmul.f32 %v1242, %v1379
          %v1381 = vmul.f32 %v1243, %v1379
          %v1382 = vadd.f32 %v1377, %v1380
          %v1383 = vadd.f32 %v1378, %v1381
          %v1384 = vstv %s400
          %v1385 = vmul.f32 %v1270, %v1384
          %v1386 = vmul.f32 %v1271, %v1384
          %v1387 = vadd.f32 %v1382, %v1385
          %v1388 = vadd.f32 %v1383, %v1386
          %v1389 = vstv %s401
          %v1390 = vmul.f32 %v1298, %v1389
          %v1391 = vmul.f32 %v1299, %v1389
          %v1392 = vadd.f32 %v1387, %v1390
          %v1393 = vadd.f32 %v1388, %v1391
          %v1394 = vstv %s402
          %v1395 = vmul.f32 %v1326, %v1394
          %v1396 = vmul.f32 %v1327, %v1394
          %v1397 = vadd.f32 %v1392, %v1395
          %v1398 = vadd.f32 %v1393, %v1396
          %v1399 = vstv %s403
          %v1400 = vmul.f32 %v1354, %v1399
          %v1401 = vmul.f32 %v1355, %v1399
          %v1402 = vadd.f32 %v1397, %v1400
          %v1403 = vadd.f32 %v1398, %v1401
          %v1404 = vstv %s434
          %v1405 = vadd.f32 %v1402, %v1404
          %v1406 = vadd.f32 %v1403, %v1404
          %v1407 = vstv %s404
          %v1408 = vmul.f32 %v1102, %v1407
          %v1409 = vmul.f32 %v1103, %v1407
          %v1410 = vstv %s405
          %v1411 = vmul.f32 %v1130, %v1410
          %v1412 = vmul.f32 %v1131, %v1410
          %v1413 = vadd.f32 %v1408, %v1411
          %v1414 = vadd.f32 %v1409, %v1412
          %v1415 = vstv %s406
          %v1416 = vmul.f32 %v1158, %v1415
          %v1417 = vmul.f32 %v1159, %v1415
          %v1418 = vadd.f32 %v1413, %v1416
          %v1419 = vadd.f32 %v1414, %v1417
          %v1420 = vstv %s407
          %v1421 = vmul.f32 %v1186, %v1420
          %v1422 = vmul.f32 %v1187, %v1420
          %v1423 = vadd.f32 %v1418, %v1421
          %v1424 = vadd.f32 %v1419, %v1422
          %v1425 = vstv %s408
          %v1426 = vmul.f32 %v1214, %v1425
          %v1427 = vmul.f32 %v1215, %v1425
          %v1428 = vadd.f32 %v1423, %v1426
          %v1429 = vadd.f32 %v1424, %v1427
          %v1430 = vstv %s409
          %v1431 = vmul.f32 %v1242, %v1430
          %v1432 = vmul.f32 %v1243, %v1430
          %v1433 = vadd.f32 %v1428, %v1431
          %v1434 = vadd.f32 %v1429, %v1432
          %v1435 = vstv %s410
          %v1436 = vmul.f32 %v1270, %v1435
          %v1437 = vmul.f32 %v1271, %v1435
          %v1438 = vadd.f32 %v1433, %v1436
          %v1439 = vadd.f32 %v1434, %v1437
          %v1440 = vstv %s411
          %v1441 = vmul.f32 %v1298, %v1440
          %v1442 = vmul.f32 %v1299, %v1440
          %v1443 = vadd.f32 %v1438, %v1441
          %v1444 = vadd.f32 %v1439, %v1442
          %v1445 = vstv %s412
          %v1446 = vmul.f32 %v1326, %v1445
          %v1447 = vmul.f32 %v1327, %v1445
          %v1448 = vadd.f32 %v1443, %v1446
          %v1449 = vadd.f32 %v1444, %v1447
          %v1450 = vstv %s413
          %v1451 = vmul.f32 %v1354, %v1450
          %v1452 = vmul.f32 %v1355, %v1450
          %v1453 = vadd.f32 %v1448, %v1451
          %v1454 = vadd.f32 %v1449, %v1452
          %v1455 = vstv %s435
          %v1456 = vadd.f32 %v1453, %v1455
          %v1457 = vadd.f32 %v1454, %v1455
          %v1458 = vstv %s414
          %v1459 = vmul.f32 %v1102, %v1458
          %v1460 = vmul.f32 %v1103, %v1458
          %v1461 = vstv %s415
          %v1462 = vmul.f32 %v1130, %v1461
          %v1463 = vmul.f32 %v1131, %v1461
          %v1464 = vadd.f32 %v1459, %v1462
          %v1465 = vadd.f32 %v1460, %v1463
          %v1466 = vstv %s416
          %v1467 = vmul.f32 %v1158, %v1466
          %v1468 = vmul.f32 %v1159, %v1466
          %v1469 = vadd.f32 %v1464, %v1467
          %v1470 = vadd.f32 %v1465, %v1468
          %v1471 = vstv %s417
          %v1472 = vmul.f32 %v1186, %v1471
          %v1473 = vmul.f32 %v1187, %v1471
          %v1474 = vadd.f32 %v1469, %v1472
          %v1475 = vadd.f32 %v1470, %v1473
          %v1476 = vstv %s418
          %v1477 = vmul.f32 %v1214, %v1476
          %v1478 = vmul.f32 %v1215, %v1476
          %v1479 = vadd.f32 %v1474, %v1477
          %v1480 = vadd.f32 %v1475, %v1478
          %v1481 = vstv %s419
          %v1482 = vmul.f32 %v1242, %v1481
          %v1483 = vmul.f32 %v1243, %v1481
          %v1484 = vadd.f32 %v1479, %v1482
          %v1485 = vadd.f32 %v1480, %v1483
          %v1486 = vstv %s420
          %v1487 = vmul.f32 %v1270, %v1486
          %v1488 = vmul.f32 %v1271, %v1486
          %v1489 = vadd.f32 %v1484, %v1487
          %v1490 = vadd.f32 %v1485, %v1488
          %v1491 = vstv %s421
          %v1492 = vmul.f32 %v1298, %v1491
          %v1493 = vmul.f32 %v1299, %v1491
          %v1494 = vadd.f32 %v1489, %v1492
          %v1495 = vadd.f32 %v1490, %v1493
          %v1496 = vstv %s422
          %v1497 = vmul.f32 %v1326, %v1496
          %v1498 = vmul.f32 %v1327, %v1496
          %v1499 = vadd.f32 %v1494, %v1497
          %v1500 = vadd.f32 %v1495, %v1498
          %v1501 = vstv %s423
          %v1502 = vmul.f32 %v1354, %v1501
          %v1503 = vmul.f32 %v1355, %v1501
          %v1504 = vadd.f32 %v1499, %v1502
          %v1505 = vadd.f32 %v1500, %v1503
          %v1506 = vstv %s436
          %v1507 = vadd.f32 %v1504, %v1506
          %v1508 = vadd.f32 %v1505, %v1506
          %v1509 = vstv %s424
          %v1510 = vmul.f32 %v1102, %v1509
          %v1511 = vmul.f32 %v1103, %v1509
          %v1512 = vstv %s425
          %v1513 = vmul.f32 %v1130, %v1512
          %v1514 = vmul.f32 %v1131, %v1512
          %v1515 = vadd.f32 %v1510, %v1513
          %v1516 = vadd.f32 %v1511, %v1514
          %v1517 = vstv %s426
          %v1518 = vmul.f32 %v1158, %v1517
          %v1519 = vmul.f32 %v1159, %v1517
          %v1520 = vadd.f32 %v1515, %v1518
          %v1521 = vadd.f32 %v1516, %v1519
          %v1522 = vstv %s427
          %v1523 = vmul.f32 %v1186, %v1522
          %v1524 = vmul.f32 %v1187, %v1522
          %v1525 = vadd.f32 %v1520, %v1523
          %v1526 = vadd.f32 %v1521, %v1524
          %v1527 = vstv %s428
          %v1528 = vmul.f32 %v1214, %v1527
          %v1529 = vmul.f32 %v1215, %v1527
          %v1530 = vadd.f32 %v1525, %v1528
          %v1531 = vadd.f32 %v1526, %v1529
          %v1532 = vstv %s429
          %v1533 = vmul.f32 %v1242, %v1532
          %v1534 = vmul.f32 %v1243, %v1532
          %v1535 = vadd.f32 %v1530, %v1533
          %v1536 = vadd.f32 %v1531, %v1534
          %v1537 = vstv %s430
          %v1538 = vmul.f32 %v1270, %v1537
          %v1539 = vmul.f32 %v1271, %v1537
          %v1540 = vadd.f32 %v1535, %v1538
          %v1541 = vadd.f32 %v1536, %v1539
          %v1542 = vstv %s431
          %v1543 = vmul.f32 %v1298, %v1542
          %v1544 = vmul.f32 %v1299, %v1542
          %v1545 = vadd.f32 %v1540, %v1543
          %v1546 = vadd.f32 %v1541, %v1544
          %v1547 = vstv %s432
          %v1548 = vmul.f32 %v1326, %v1547
          %v1549 = vmul.f32 %v1327, %v1547
          %v1550 = vadd.f32 %v1545, %v1548
          %v1551 = vadd.f32 %v1546, %v1549
          %v1552 = vstv %s433
          %v1553 = vmul.f32 %v1354, %v1552
          %v1554 = vmul.f32 %v1355, %v1552
          %v1555 = vadd.f32 %v1550, %v1553
          %v1556 = vadd.f32 %v1551, %v1554
          %v1557 = vstv %s437
          %v1558 = vadd.f32 %v1555, %v1557
          %v1559 = vadd.f32 %v1556, %v1557
          %s1560 = smul.addr %s444, 8
          %s1561 = scalar_lea.vmem %s199, %s1560 [#allocation7]
          %1562 = vst [vmem:[%s1561] sm:$0xff] %v1405
          %1563 = vst [vmem:[%s1561 + $0x8] sm:$0xff] %v1406
          %s1564 = smul.addr %s449, 8
          %s1565 = scalar_lea.vmem %s199, %s1564 [#allocation7]
          %1566 = vst [vmem:[%s1565] sm:$0xff] %v1456
          %1567 = vst [vmem:[%s1565 + $0x8] sm:$0xff] %v1457
          %s1568 = smul.addr %s454, 8
          %s1569 = scalar_lea.vmem %s199, %s1568 [#allocation7]
          %1570 = vst [vmem:[%s1569] sm:$0xff] %v1507
          %1571 = vst [vmem:[%s1569 + $0x8] sm:$0xff] %v1508
          %s1572 = smul.addr %s459, 8
          %s1573 = scalar_lea.vmem %s199, %s1572 [#allocation7]
          %1574 = vst [vmem:[%s1573] sm:$0xff] %v1558
          %1575 = vst [vmem:[%s1573 + $0x8] sm:$0xff] %v1559
        $region41: #{tpu_custom_call.1} parent=27 // loop_footer
          %s443 = sadd.s32 1, %s439
        $region42: #{tpu_custom_call.1} parent=27 // loop_footer_branch
          %438 = sbr.rel target = $region38
        $region43: #{tpu_custom_call.1} parent=27 // loop_exit
          _
        %s1576 = sand.u32 %s75, 1
        %s1577 = scalar_lea.sflag [#allocation4], %s1576
        %s1578 = sand.u32 %s75, 1
        %s1579 = smul.addr %s1578, 128
        %s1580 = scalar_lea.vmem [#allocation7], %s1579
        // Predicated region
        $region44: #{tpu_custom_call.1} parent=27 // pred_check
          %p1581 = pneg %p85
        $region45: #{tpu_custom_call.1} parent=27 // pred_check_branch
          %1583 = sbr.rel (%p1581) target = $region47
        $region46: #{tpu_custom_call.1} parent=27 // pred_region
          #allocation11 [shape = 'u32[6]{0}', space=smem, size = 0x18, scoped, tag = 'DMA stride descriptor']
          %s1584 = smul.u32 2, %s20
          %s1586 = ssub.s32 2048, 2048
          %1587 = vsyncadd %s1577, %s1586
          %s1588 = smul.addr %s1584, 2
          %s1589 = smul.addr %s1588, 128
          %s1590 = scalar_lea.hbm %s2, %s1589
          %s1592 = sshll.u32 1, 14
          %s1593 = sxor.u32 4294967295, %s1592
          %s1596 = sshll.u32 7, 18
          %s1597 = sxor.u32 4294967295, %s1596
          %s1598 = sand.u32 0, %s1597
          %s1600 = sor.u32 %s1598, 0
          %s1602 = sshll.u32 3, 24
          %s1603 = sxor.u32 4294967295, %s1602
          %s1604 = sand.u32 %s1600, %s1603
          %s1606 = sor.u32 %s1604, 0
          %s1607 = sshll.u32 %s1580, 4
          %s1608 = int_to_ptr.vmem [resolvable:$true] %s1607
          %1614 = sst [smem:[#allocation11]] 512
          %s1615 = scalar_lea.smem [#allocation11], 1
          %1616 = sst [smem:[%s1615]] 1024
          %s1617 = scalar_lea.smem [#allocation11], 2
          %1618 = sst [smem:[%s1617]] 2
          %s1619 = scalar_lea.smem [#allocation11], 3
          %1620 = sst [smem:[%s1619]] 256
          %s1621 = scalar_lea.smem [#allocation11], 4
          %1622 = sst [smem:[%s1621]] 256
          %s1623 = scalar_lea.smem [#allocation11], 5
          %1624 = sst [smem:[%s1623]] 16
          %1626 = dma.general %s1608, 2048, %s1590, %s1577, [#allocation10], [#allocation11], %s1606, 0
        $region47: #{tpu_custom_call.1} parent=27 // pred_fallthru
          _
      $region28: #{tpu_custom_call.1} parent=5 // pred_fallthru
        _
      %p1627 = scmp.le.s32.totalorder 2, %s15
      // Predicated region
      $region48: #{tpu_custom_call.1} parent=5 // pred_check
        %p1628 = pneg %p1627
      $region49: #{tpu_custom_call.1} parent=5 // pred_check_branch
        %1630 = sbr.rel (%p1628) target = $region51
      $region50: #{tpu_custom_call.1} parent=5 // pred_region
        %s1631 = ssub.s32 %s15, 2
        // Predicated region
        $region52: #{tpu_custom_call.1} parent=50 // pred_check
          %p1632 = pneg %p91
        $region53: #{tpu_custom_call.1} parent=50 // pred_check_branch
          %1634 = sbr.rel (%p1632) target = $region55
        $region54: #{tpu_custom_call.1} parent=50 // pred_region
          %s1635 = sand.u32 %s76, 1
          %s1636 = scalar_lea.sflag [#allocation4], %s1635
          %s1637 = sand.u32 %s76, 1
          %s1638 = smul.addr %s1637, 128
          %s1639 = scalar_lea.vmem [#allocation7], %s1638
          %1640 = dma.done %s1636, 2048
        $region55: #{tpu_custom_call.1} parent=50 // pred_fallthru
          _
      $region51: #{tpu_custom_call.1} parent=5 // pred_fallthru
        _
    $region6: #{tpu_custom_call.1} parent=1 // loop_footer
      %s19 = sadd.s32 1, %s15
    $region7: #{tpu_custom_call.1} parent=1 // loop_footer_branch
      %14 = sbr.rel target = $region3
    $region8: #{tpu_custom_call.1} parent=1 // loop_exit
      _
    %1641 = vsyncpa [#allocation3], 1
    %s1642 = scalar_lea.sflag [#allocation3], 1
    %1643 = vsyncpa %s1642, 1
    %1644 = vsyncpa [#allocation4], 1
    %s1645 = scalar_lea.sflag [#allocation4], 1
    %1646 = vsyncpa %s1645, 1
    %1647 = vsyncpa [#allocation5], 1
    %s1648 = scalar_lea.sflag [#allocation5], 1
    %1649 = vsyncpa %s1648, 1

</llo_original>
